<compile_context>
chip_gen: v7x
topology: tpu7x:2x2x1
jax: 0.10.0
libtpu: 0.0.40
codegen_flags: <defaults>
</compile_context>

<pallas_src>
import math
from functools import partial

import jax
import jax.numpy as jnp
from jax import lax
from jax.experimental import pallas as pl
from jax.experimental.pallas import tpu as pltpu

# ---------------- config (small, consistent with the module) ----------------
BATCH = 2
SEQ = 8
HIDDEN = 32
NUM_HEADS = 4
HEAD_DIM = HIDDEN // NUM_HEADS
INTERMEDIATE = 64
LN_EPS = 1e-5


def _layer_norm(x, gamma, beta):
    # Single-pass form: sum(x) and sum(x*x) are independent reductions so the
    # scheduler can overlap the two cross-lane (XLU) reduces.
    n = x.shape[-1]
    inv_n = 1.0 / n
    s1 = jnp.sum(x, axis=-1, keepdims=True)
    s2 = jnp.sum(x * x, axis=-1, keepdims=True)
    mean = s1 * inv_n
    var = s2 * inv_n - mean * mean
    return (x - mean) * lax.rsqrt(var + LN_EPS) * gamma + beta


def _gelu_exact(x):
    # nn.GELU() default = exact erf formulation
    return 0.5 * x * (1.0 + lax.erf(x * (1.0 / math.sqrt(2.0))))


def encoder_layer_kernel(
    x_ref,
    ln1g_ref, ln1b_ref,
    wqkv_ref, bqkv_ref,
    wo_ref, bo_ref,
    ln2g_ref, ln2b_ref,
    w1_ref, b1_ref, w2_ref, b2_ref,
    out_ref,
    *, num_heads, head_dim,
):
    BB, S, H = x_ref.shape
    BS = BB * S

    # (BB, S, H) -> (BS, H): merge leading dims, lane dim untouched (cheap).
    x = x_ref[...].reshape(BS, H)                          # already f32

    # ---- pre-norm 1 + fused QKV projection (single MXU op) ----
    h = _layer_norm(x, ln1g_ref[...], ln1b_ref[...])
    qkv = jnp.dot(h, wqkv_ref[...],
                  preferred_element_type=jnp.float32) + bqkv_ref[...]   # (BS, 3H)

    scale = 1.0 / math.sqrt(head_dim)

    # Heads unrolled at trace time.  Each head's context is immediately folded
    # into the output projection by multiplying with the matching sublane rows
    # of wo (static, 8-aligned slice) and accumulating into `attn` in registers:
    # no VMEM scratch slab, no concatenate, no extra readback.
    attn = x + bo_ref[...]                                  # residual + output bias
    for hd in range(num_heads):
        lo = hd * head_dim
        qh = qkv[:, lo:lo + head_dim].reshape(BB, S, head_dim)
        kh = qkv[:, H + lo:H + lo + head_dim].reshape(BB, S, head_dim)
        vh = qkv[:, 2 * H + lo:2 * H + lo + head_dim].reshape(BB, S, head_dim)

        s = jnp.einsum('bqd,bkd->bqk', qh, kh,
                       preferred_element_type=jnp.float32) * scale
        s = s - jnp.max(s, axis=-1, keepdims=True)
        p = jnp.exp(s)
        # Exact reciprocal: keeps strict softmax parity; negligible cost here.
        inv = pl.reciprocal(jnp.sum(p, axis=-1, keepdims=True), approx=False)
        p = p * inv
        ctx = jnp.einsum('bqk,bkd->bqd', p, vh,
                         preferred_element_type=jnp.float32)
        wo_h = wo_ref[lo:lo + head_dim, :]                  # (head_dim, H) static view
        attn = attn + jnp.dot(ctx.reshape(BS, head_dim), wo_h,
                              preferred_element_type=jnp.float32)

    x1 = attn                                               # == x + MHA(LN1(x))

    # ---- pre-norm 2 + feed forward ----
    h2 = _layer_norm(x1, ln2g_ref[...], ln2b_ref[...])
    mid = jnp.dot(h2, w1_ref[...], preferred_element_type=jnp.float32) + b1_ref[...]
    mid = _gelu_exact(mid)
    ff = jnp.dot(mid, w2_ref[...], preferred_element_type=jnp.float32) + b2_ref[...]
    # TODO(synk): nn.Dropout is identity in eval mode; no RNG dropout implemented.

    out_ref[...] = (x1 + ff).reshape(BB, S, H).astype(out_ref.dtype)


def transformer_encoder_layer(x, params, *, num_heads=NUM_HEADS):
    B, S, H = x.shape
    head_dim = H // num_heads
    inter = params["w1"].shape[1]

    # Fuse Q/K/V projections into one (H, 3H) weight / (1, 3H) bias (host side).
    wqkv = jnp.concatenate([params["wq"], params["wk"], params["wv"]], axis=1)
    bqkv = jnp.concatenate([params["bq"], params["bk"], params["bv"]], axis=1)

    weights = [
        params["ln1_g"], params["ln1_b"],
        wqkv, bqkv,
        params["wo"], params["bo"],
        params["ln2_g"], params["ln2_b"],
        params["w1"], params["b1"], params["w2"], params["b2"],
    ]

    # One grid step holding the whole batch on every chip generation: avoids
    # per-core duplicated weight DMA and per-step pipeline overhead, and keeps
    # matmul M at its maximum (B*S).
    grid = (1,)

    def full_spec(w):
        nd = w.ndim
        return pl.BlockSpec(w.shape, lambda i, _n=nd: (0,) * _n)

    in_specs = [pl.BlockSpec((B, S, H), lambda i: (0, 0, 0))]
    in_specs += [full_spec(w) for w in weights]

    kernel = partial(encoder_layer_kernel, num_heads=num_heads, head_dim=head_dim)

    # Advisory cost estimate so XLA schedules this tiny custom call sensibly.
    flops = int(
        2 * B * S * H * 3 * H                       # fused QKV
        + 4 * B * num_heads * S * S * head_dim      # scores + PV
        + 2 * B * S * H * H                         # output projection (per-head folded)
        + 2 * B * S * H * inter                     # FFN in
        + 2 * B * S * inter * H                     # FFN out
    )
    transcendentals = int(B * num_heads * S * S + B * S * inter + 4 * B * S)
    bytes_accessed = int(4 * (2 * B * S * H + sum(int(w.size) for w in weights)))

    return pl.pallas_call(
        kernel,
        out_shape=jax.ShapeDtypeStruct((B, S, H), x.dtype),
        grid_spec=pltpu.PrefetchScalarGridSpec(
            num_scalar_prefetch=0,
            grid=grid,
            in_specs=in_specs,
            out_specs=pl.BlockSpec((B, S, H), lambda i: (0, 0, 0)),
            scratch_shapes=[],
        ),
        compiler_params=pltpu.CompilerParams(
            dimension_semantics=("arbitrary",),
        ),
        cost_estimate=pl.CostEstimate(
            flops=flops,
            transcendentals=transcendentals,
            bytes_accessed=bytes_accessed,
        ),
    )(x, *weights)


# ---------------- deterministic parameter init ----------------
def init_params(key):
    keys = jax.random.split(key, 16)

    def lin(k, fan_in, fan_out):
        # uniform(-1/sqrt(fan_in), 1/sqrt(fan_in)) like nn.Linear, stored as (in, out)
        bound = 1.0 / math.sqrt(fan_in)
        kw, kb = jax.random.split(k)
        w = jax.random.uniform(kw, (fan_in, fan_out), jnp.float32, -bound, bound)
        b = jax.random.uniform(kb, (1, fan_out), jnp.float32, -bound, bound)
        return w, b

    # per-head q/k/v projections concatenated along the output dim
    wq, bq = lin(keys[0], HIDDEN, HIDDEN)
    wk, bk = lin(keys[1], HIDDEN, HIDDEN)
    wv, bv = lin(keys[2], HIDDEN, HIDDEN)
    wo, bo = lin(keys[3], HIDDEN, HIDDEN)
    w1, b1 = lin(keys[4], HIDDEN, INTERMEDIATE)
    w2, b2 = lin(keys[5], INTERMEDIATE, HIDDEN)

    return {
        "ln1_g": jnp.ones((1, HIDDEN), jnp.float32),
        "ln1_b": jnp.zeros((1, HIDDEN), jnp.float32),
        "wq": wq, "bq": bq, "wk": wk, "bk": bk, "wv": wv, "bv": bv,
        "wo": wo, "bo": bo,
        "ln2_g": jnp.ones((1, HIDDEN), jnp.float32),
        "ln2_b": jnp.zeros((1, HIDDEN), jnp.float32),
        "w1": w1, "b1": b1, "w2": w2, "b2": b2,
    }


# ---------------- pure-JAX reference for a sanity check ----------------
def reference(x, p):
    def ln(v, g, b):
        m = jnp.mean(v, axis=-1, keepdims=True)
        var = jnp.mean((v - m) ** 2, axis=-1, keepdims=True)
        return (v - m) * lax.rsqrt(var + LN_EPS) * g + b

    h = ln(x, p["ln1_g"], p["ln1_b"])
    q = h @ p["wq"] + p["bq"]
    k = h @ p["wk"] + p["bk"]
    v = h @ p["wv"] + p["bv"]
    B, S, H = x.shape
    qh = q.reshape(B, S, NUM_HEADS, HEAD_DIM).transpose(0, 2, 1, 3)
    kh = k.reshape(B, S, NUM_HEADS, HEAD_DIM).transpose(0, 2, 1, 3)
    vh = v.reshape(B, S, NUM_HEADS, HEAD_DIM).transpose(0, 2, 1, 3)
    scores = jnp.einsum("bhqd,bhkd->bhqk", qh, kh) / math.sqrt(HEAD_DIM)
    w = jax.nn.softmax(scores, axis=-1)
    attn = jnp.einsum("bhqk,bhkd->bhqd", w, vh).transpose(0, 2, 1, 3).reshape(B, S, H)
    attn = attn @ p["wo"] + p["bo"]
    x1 = x + attn
    h2 = ln(x1, p["ln2_g"], p["ln2_b"])
    mid = jax.nn.gelu(h2 @ p["w1"] + p["b1"], approximate=False)
    ff = mid @ p["w2"] + p["b2"]
    return x1 + ff


if __name__ == "__main__":
    key = jax.random.PRNGKey(0)
    kx, kp = jax.random.split(key)
    x = jax.random.normal(kx, (BATCH, SEQ, HIDDEN), jnp.float32)
    params = init_params(kp)

    out = transformer_encoder_layer(x, params)
    out = jax.block_until_ready(out)

    ref = reference(x, params)
    assert out.shape == ref.shape
    err = float(jnp.max(jnp.abs(out - ref)))
    assert err < 2e-3, err
    print("KERNEL_OK")
</pallas_src>

<mosaic_0001>
module attributes {stable_mosaic.version = 11 : i64} {
  func.func @encoder_layer_kernel(%arg0: i32, %arg1: memref<2x8x32xf32, #tpu.memory_space<vmem>>, %arg2: memref<1x32xf32, #tpu.memory_space<vmem>>, %arg3: memref<1x32xf32, #tpu.memory_space<vmem>>, %arg4: memref<32x96xf32, #tpu.memory_space<vmem>>, %arg5: memref<1x96xf32, #tpu.memory_space<vmem>>, %arg6: memref<32x32xf32, #tpu.memory_space<vmem>>, %arg7: memref<1x32xf32, #tpu.memory_space<vmem>>, %arg8: memref<1x32xf32, #tpu.memory_space<vmem>>, %arg9: memref<1x32xf32, #tpu.memory_space<vmem>>, %arg10: memref<32x64xf32, #tpu.memory_space<vmem>>, %arg11: memref<1x64xf32, #tpu.memory_space<vmem>>, %arg12: memref<64x32xf32, #tpu.memory_space<vmem>>, %arg13: memref<1x32xf32, #tpu.memory_space<vmem>>, %arg14: memref<2x8x32xf32, #tpu.memory_space<vmem>>) attributes {dimension_semantics = [#tpu.dimension_semantics<arbitrary>], iteration_bounds = array<i64: 1>, scalar_prefetch = 0 : i64, scratch_operands = 0 : i64, tpu.core_type = #tpu.core_type<tc>, window_params = [{pipeline_mode = #tpu.pipeline_mode<synchronous>, transform_indices = @transform_0, window_bounds = array<i64: 2, 8, 32>}, {pipeline_mode = #tpu.pipeline_mode<synchronous>, transform_indices = @transform_1, window_bounds = array<i64: 1, 32>}, {pipeline_mode = #tpu.pipeline_mode<synchronous>, transform_indices = @transform_2, window_bounds = array<i64: 1, 32>}, {pipeline_mode = #tpu.pipeline_mode<synchronous>, transform_indices = @transform_3, window_bounds = array<i64: 32, 96>}, {pipeline_mode = #tpu.pipeline_mode<synchronous>, transform_indices = @transform_4, window_bounds = array<i64: 1, 96>}, {pipeline_mode = #tpu.pipeline_mode<synchronous>, transform_indices = @transform_5, window_bounds = array<i64: 32, 32>}, {pipeline_mode = #tpu.pipeline_mode<synchronous>, transform_indices = @transform_6, window_bounds = array<i64: 1, 32>}, {pipeline_mode = #tpu.pipeline_mode<synchronous>, transform_indices = @transform_7, window_bounds = array<i64: 1, 32>}, {pipeline_mode = #tpu.pipeline_mode<synchronous>, transform_indices = @transform_8, window_bounds = array<i64: 1, 32>}, {pipeline_mode = #tpu.pipeline_mode<synchronous>, transform_indices = @transform_9, window_bounds = array<i64: 32, 64>}, {pipeline_mode = #tpu.pipeline_mode<synchronous>, transform_indices = @transform_10, window_bounds = array<i64: 1, 64>}, {pipeline_mode = #tpu.pipeline_mode<synchronous>, transform_indices = @transform_11, window_bounds = array<i64: 64, 32>}, {pipeline_mode = #tpu.pipeline_mode<synchronous>, transform_indices = @transform_12, window_bounds = array<i64: 1, 32>}, {pipeline_mode = #tpu.pipeline_mode<synchronous>, transform_indices = @transform_13, window_bounds = array<i64: 2, 8, 32>}]} {
    %c0 = arith.constant 0 : index
    %c0_0 = arith.constant 0 : index
    %c0_1 = arith.constant 0 : index
    %0 = vector.load %arg1[%c0, %c0_0, %c0_1] : memref<2x8x32xf32, #tpu.memory_space<vmem>>, vector<2x8x32xf32>
    %1 = vector.shape_cast %0 : vector<2x8x32xf32> to vector<16x32xf32>
    %c0_2 = arith.constant 0 : index
    %c0_3 = arith.constant 0 : index
    %2 = vector.load %arg2[%c0_2, %c0_3] : memref<1x32xf32, #tpu.memory_space<vmem>>, vector<1x32xf32>
    %c0_4 = arith.constant 0 : index
    %c0_5 = arith.constant 0 : index
    %3 = vector.load %arg3[%c0_4, %c0_5] : memref<1x32xf32, #tpu.memory_space<vmem>>, vector<1x32xf32>
    %cst = arith.constant dense<0.000000e+00> : vector<16xf32>
    %4 = vector.multi_reduction <add>, %1, %cst [1] : vector<16x32xf32> to vector<16xf32>
    %5 = vector.shape_cast %4 : vector<16xf32> to vector<16x1xf32>
    %6 = arith.mulf %1, %1 : vector<16x32xf32>
    %cst_6 = arith.constant dense<0.000000e+00> : vector<16xf32>
    %7 = vector.multi_reduction <add>, %6, %cst_6 [1] : vector<16x32xf32> to vector<16xf32>
    %8 = vector.shape_cast %7 : vector<16xf32> to vector<16x1xf32>
    %cst_7 = arith.constant 3.125000e-02 : f32
    %9 = vector.broadcast %cst_7 : f32 to vector<16x1xf32>
    %10 = arith.mulf %5, %9 : vector<16x1xf32>
    %cst_8 = arith.constant 3.125000e-02 : f32
    %11 = vector.broadcast %cst_8 : f32 to vector<16x1xf32>
    %12 = arith.mulf %8, %11 : vector<16x1xf32>
    %13 = arith.mulf %10, %10 : vector<16x1xf32>
    %14 = arith.subf %12, %13 : vector<16x1xf32>
    %15 = vector.broadcast %10 : vector<16x1xf32> to vector<16x32xf32>
    %16 = arith.subf %1, %15 : vector<16x32xf32>
    %cst_9 = arith.constant 9.99999974E-6 : f32
    %17 = vector.broadcast %cst_9 : f32 to vector<16x1xf32>
    %18 = arith.addf %14, %17 : vector<16x1xf32>
    %19 = math.rsqrt %18 : vector<16x1xf32>
    %20 = vector.broadcast %19 : vector<16x1xf32> to vector<16x32xf32>
    %21 = arith.mulf %16, %20 : vector<16x32xf32>
    %22 = vector.broadcast %2 : vector<1x32xf32> to vector<16x32xf32>
    %23 = arith.mulf %21, %22 : vector<16x32xf32>
    %24 = vector.broadcast %3 : vector<1x32xf32> to vector<16x32xf32>
    %25 = arith.addf %23, %24 : vector<16x32xf32>
    %c0_10 = arith.constant 0 : index
    %c0_11 = arith.constant 0 : index
    %26 = vector.load %arg4[%c0_10, %c0_11] : memref<32x96xf32, #tpu.memory_space<vmem>>, vector<32x96xf32>
    %cst_12 = arith.constant dense<0.000000e+00> : vector<16x96xf32>
    %27 = tpu.matmul %25, %26, %cst_12 {dimension_numbers = #tpu.dot_dimension_numbers<[1], [0], [0], [1], [0, 0, 1, 1], [], []>} : vector<16x32xf32>, vector<32x96xf32>, vector<16x96xf32> -> vector<16x96xf32>
    %c0_13 = arith.constant 0 : index
    %c0_14 = arith.constant 0 : index
    %28 = vector.load %arg5[%c0_13, %c0_14] : memref<1x96xf32, #tpu.memory_space<vmem>>, vector<1x96xf32>
    %29 = vector.broadcast %28 : vector<1x96xf32> to vector<16x96xf32>
    %30 = arith.addf %27, %29 : vector<16x96xf32>
    %c0_15 = arith.constant 0 : index
    %c0_16 = arith.constant 0 : index
    %31 = vector.load %arg7[%c0_15, %c0_16] : memref<1x32xf32, #tpu.memory_space<vmem>>, vector<1x32xf32>
    %32 = vector.broadcast %31 : vector<1x32xf32> to vector<16x32xf32>
    %33 = arith.addf %1, %32 : vector<16x32xf32>
    %34 = vector.extract_strided_slice %30 {offsets = [0, 0], sizes = [16, 8], strides = [1, 1]} : vector<16x96xf32> to vector<16x8xf32>
    %35 = vector.shape_cast %34 : vector<16x8xf32> to vector<2x8x8xf32>
    %36 = vector.extract_strided_slice %30 {offsets = [0, 32], sizes = [16, 8], strides = [1, 1]} : vector<16x96xf32> to vector<16x8xf32>
    %37 = vector.shape_cast %36 : vector<16x8xf32> to vector<2x8x8xf32>
    %38 = vector.extract_strided_slice %30 {offsets = [0, 64], sizes = [16, 8], strides = [1, 1]} : vector<16x96xf32> to vector<16x8xf32>
    %39 = vector.shape_cast %38 : vector<16x8xf32> to vector<2x8x8xf32>
    "tpu.trace_start"() <{level = 10 : i32, message = "bqd,bkd->bqk"}> : () -> ()
    %cst_17 = arith.constant dense<0.000000e+00> : vector<2x8x8xf32>
    %40 = tpu.matmul %35, %37, %cst_17 {dimension_numbers = #tpu.dot_dimension_numbers<[2], [2], [1], [1], [0, 0, 0, 1, 1, 1], [0], [0]>} : vector<2x8x8xf32>, vector<2x8x8xf32>, vector<2x8x8xf32> -> vector<2x8x8xf32>
    "tpu.trace_stop"() : () -> ()
    %cst_18 = arith.constant 0.353553385 : f32
    %41 = vector.broadcast %cst_18 : f32 to vector<2x8x8xf32>
    %42 = arith.mulf %40, %41 : vector<2x8x8xf32>
    %cst_19 = arith.constant dense<0xFF800000> : vector<2x8xf32>
    %43 = vector.multi_reduction <maximumf>, %42, %cst_19 [2] : vector<2x8x8xf32> to vector<2x8xf32>
    %44 = vector.shape_cast %43 : vector<2x8xf32> to vector<2x8x1xf32>
    %45 = vector.broadcast %44 : vector<2x8x1xf32> to vector<2x8x8xf32>
    %46 = arith.subf %42, %45 : vector<2x8x8xf32>
    %47 = math.exp %46 : vector<2x8x8xf32>
    %cst_20 = arith.constant dense<0.000000e+00> : vector<2x8xf32>
    %48 = vector.multi_reduction <add>, %47, %cst_20 [2] : vector<2x8x8xf32> to vector<2x8xf32>
    %49 = vector.shape_cast %48 : vector<2x8xf32> to vector<2x8x1xf32>
    %50 = tpu.reciprocal %49 : vector<2x8x1xf32> -> vector<2x8x1xf32>
    %51 = vector.broadcast %50 : vector<2x8x1xf32> to vector<2x8x8xf32>
    %52 = arith.mulf %47, %51 : vector<2x8x8xf32>
    "tpu.trace_start"() <{level = 10 : i32, message = "bqk,bkd->bqd"}> : () -> ()
    %cst_21 = arith.constant dense<0.000000e+00> : vector<2x8x8xf32>
    %53 = tpu.matmul %52, %39, %cst_21 {dimension_numbers = #tpu.dot_dimension_numbers<[2], [1], [1], [2], [0, 0, 0, 1, 1, 2], [0], [0]>} : vector<2x8x8xf32>, vector<2x8x8xf32>, vector<2x8x8xf32> -> vector<2x8x8xf32>
    "tpu.trace_stop"() : () -> ()
    %c0_22 = arith.constant 0 : index
    %c0_23 = arith.constant 0 : index
    %54 = vector.load %arg6[%c0_22, %c0_23] : memref<32x32xf32, #tpu.memory_space<vmem>>, vector<8x32xf32>
    %55 = vector.shape_cast %53 : vector<2x8x8xf32> to vector<16x8xf32>
    %cst_24 = arith.constant dense<0.000000e+00> : vector<16x32xf32>
    %56 = tpu.matmul %55, %54, %cst_24 {dimension_numbers = #tpu.dot_dimension_numbers<[1], [0], [0], [1], [0, 0, 1, 1], [], []>} : vector<16x8xf32>, vector<8x32xf32>, vector<16x32xf32> -> vector<16x32xf32>
    %57 = arith.addf %33, %56 : vector<16x32xf32>
    %58 = vector.extract_strided_slice %30 {offsets = [0, 8], sizes = [16, 8], strides = [1, 1]} : vector<16x96xf32> to vector<16x8xf32>
    %59 = vector.shape_cast %58 : vector<16x8xf32> to vector<2x8x8xf32>
    %60 = vector.extract_strided_slice %30 {offsets = [0, 40], sizes = [16, 8], strides = [1, 1]} : vector<16x96xf32> to vector<16x8xf32>
    %61 = vector.shape_cast %60 : vector<16x8xf32> to vector<2x8x8xf32>
    %62 = vector.extract_strided_slice %30 {offsets = [0, 72], sizes = [16, 8], strides = [1, 1]} : vector<16x96xf32> to vector<16x8xf32>
    %63 = vector.shape_cast %62 : vector<16x8xf32> to vector<2x8x8xf32>
    "tpu.trace_start"() <{level = 10 : i32, message = "bqd,bkd->bqk"}> : () -> ()
    %cst_25 = arith.constant dense<0.000000e+00> : vector<2x8x8xf32>
    %64 = tpu.matmul %59, %61, %cst_25 {dimension_numbers = #tpu.dot_dimension_numbers<[2], [2], [1], [1], [0, 0, 0, 1, 1, 1], [0], [0]>} : vector<2x8x8xf32>, vector<2x8x8xf32>, vector<2x8x8xf32> -> vector<2x8x8xf32>
    "tpu.trace_stop"() : () -> ()
    %cst_26 = arith.constant 0.353553385 : f32
    %65 = vector.broadcast %cst_26 : f32 to vector<2x8x8xf32>
    %66 = arith.mulf %64, %65 : vector<2x8x8xf32>
    %cst_27 = arith.constant dense<0xFF800000> : vector<2x8xf32>
    %67 = vector.multi_reduction <maximumf>, %66, %cst_27 [2] : vector<2x8x8xf32> to vector<2x8xf32>
    %68 = vector.shape_cast %67 : vector<2x8xf32> to vector<2x8x1xf32>
    %69 = vector.broadcast %68 : vector<2x8x1xf32> to vector<2x8x8xf32>
    %70 = arith.subf %66, %69 : vector<2x8x8xf32>
    %71 = math.exp %70 : vector<2x8x8xf32>
    %cst_28 = arith.constant dense<0.000000e+00> : vector<2x8xf32>
    %72 = vector.multi_reduction <add>, %71, %cst_28 [2] : vector<2x8x8xf32> to vector<2x8xf32>
    %73 = vector.shape_cast %72 : vector<2x8xf32> to vector<2x8x1xf32>
    %74 = tpu.reciprocal %73 : vector<2x8x1xf32> -> vector<2x8x1xf32>
    %75 = vector.broadcast %74 : vector<2x8x1xf32> to vector<2x8x8xf32>
    %76 = arith.mulf %71, %75 : vector<2x8x8xf32>
    "tpu.trace_start"() <{level = 10 : i32, message = "bqk,bkd->bqd"}> : () -> ()
    %cst_29 = arith.constant dense<0.000000e+00> : vector<2x8x8xf32>
    %77 = tpu.matmul %76, %63, %cst_29 {dimension_numbers = #tpu.dot_dimension_numbers<[2], [1], [1], [2], [0, 0, 0, 1, 1, 2], [0], [0]>} : vector<2x8x8xf32>, vector<2x8x8xf32>, vector<2x8x8xf32> -> vector<2x8x8xf32>
    "tpu.trace_stop"() : () -> ()
    %c8 = arith.constant 8 : index
    %c0_30 = arith.constant 0 : index
    %78 = vector.load %arg6[%c8, %c0_30] : memref<32x32xf32, #tpu.memory_space<vmem>>, vector<8x32xf32>
    %79 = vector.shape_cast %77 : vector<2x8x8xf32> to vector<16x8xf32>
    %cst_31 = arith.constant dense<0.000000e+00> : vector<16x32xf32>
    %80 = tpu.matmul %79, %78, %cst_31 {dimension_numbers = #tpu.dot_dimension_numbers<[1], [0], [0], [1], [0, 0, 1, 1], [], []>} : vector<16x8xf32>, vector<8x32xf32>, vector<16x32xf32> -> vector<16x32xf32>
    %81 = arith.addf %57, %80 : vector<16x32xf32>
    %82 = vector.extract_strided_slice %30 {offsets = [0, 16], sizes = [16, 8], strides = [1, 1]} : vector<16x96xf32> to vector<16x8xf32>
    %83 = vector.shape_cast %82 : vector<16x8xf32> to vector<2x8x8xf32>
    %84 = vector.extract_strided_slice %30 {offsets = [0, 48], sizes = [16, 8], strides = [1, 1]} : vector<16x96xf32> to vector<16x8xf32>
    %85 = vector.shape_cast %84 : vector<16x8xf32> to vector<2x8x8xf32>
    %86 = vector.extract_strided_slice %30 {offsets = [0, 80], sizes = [16, 8], strides = [1, 1]} : vector<16x96xf32> to vector<16x8xf32>
    %87 = vector.shape_cast %86 : vector<16x8xf32> to vector<2x8x8xf32>
    "tpu.trace_start"() <{level = 10 : i32, message = "bqd,bkd->bqk"}> : () -> ()
    %cst_32 = arith.constant dense<0.000000e+00> : vector<2x8x8xf32>
    %88 = tpu.matmul %83, %85, %cst_32 {dimension_numbers = #tpu.dot_dimension_numbers<[2], [2], [1], [1], [0, 0, 0, 1, 1, 1], [0], [0]>} : vector<2x8x8xf32>, vector<2x8x8xf32>, vector<2x8x8xf32> -> vector<2x8x8xf32>
    "tpu.trace_stop"() : () -> ()
    %cst_33 = arith.constant 0.353553385 : f32
    %89 = vector.broadcast %cst_33 : f32 to vector<2x8x8xf32>
    %90 = arith.mulf %88, %89 : vector<2x8x8xf32>
    %cst_34 = arith.constant dense<0xFF800000> : vector<2x8xf32>
    %91 = vector.multi_reduction <maximumf>, %90, %cst_34 [2] : vector<2x8x8xf32> to vector<2x8xf32>
    %92 = vector.shape_cast %91 : vector<2x8xf32> to vector<2x8x1xf32>
    %93 = vector.broadcast %92 : vector<2x8x1xf32> to vector<2x8x8xf32>
    %94 = arith.subf %90, %93 : vector<2x8x8xf32>
    %95 = math.exp %94 : vector<2x8x8xf32>
    %cst_35 = arith.constant dense<0.000000e+00> : vector<2x8xf32>
    %96 = vector.multi_reduction <add>, %95, %cst_35 [2] : vector<2x8x8xf32> to vector<2x8xf32>
    %97 = vector.shape_cast %96 : vector<2x8xf32> to vector<2x8x1xf32>
    %98 = tpu.reciprocal %97 : vector<2x8x1xf32> -> vector<2x8x1xf32>
    %99 = vector.broadcast %98 : vector<2x8x1xf32> to vector<2x8x8xf32>
    %100 = arith.mulf %95, %99 : vector<2x8x8xf32>
    "tpu.trace_start"() <{level = 10 : i32, message = "bqk,bkd->bqd"}> : () -> ()
    %cst_36 = arith.constant dense<0.000000e+00> : vector<2x8x8xf32>
    %101 = tpu.matmul %100, %87, %cst_36 {dimension_numbers = #tpu.dot_dimension_numbers<[2], [1], [1], [2], [0, 0, 0, 1, 1, 2], [0], [0]>} : vector<2x8x8xf32>, vector<2x8x8xf32>, vector<2x8x8xf32> -> vector<2x8x8xf32>
    "tpu.trace_stop"() : () -> ()
    %c16 = arith.constant 16 : index
    %c0_37 = arith.constant 0 : index
    %102 = vector.load %arg6[%c16, %c0_37] : memref<32x32xf32, #tpu.memory_space<vmem>>, vector<8x32xf32>
    %103 = vector.shape_cast %101 : vector<2x8x8xf32> to vector<16x8xf32>
    %cst_38 = arith.constant dense<0.000000e+00> : vector<16x32xf32>
    %104 = tpu.matmul %103, %102, %cst_38 {dimension_numbers = #tpu.dot_dimension_numbers<[1], [0], [0], [1], [0, 0, 1, 1], [], []>} : vector<16x8xf32>, vector<8x32xf32>, vector<16x32xf32> -> vector<16x32xf32>
    %105 = arith.addf %81, %104 : vector<16x32xf32>
    %106 = vector.extract_strided_slice %30 {offsets = [0, 24], sizes = [16, 8], strides = [1, 1]} : vector<16x96xf32> to vector<16x8xf32>
    %107 = vector.shape_cast %106 : vector<16x8xf32> to vector<2x8x8xf32>
    %108 = vector.extract_strided_slice %30 {offsets = [0, 56], sizes = [16, 8], strides = [1, 1]} : vector<16x96xf32> to vector<16x8xf32>
    %109 = vector.shape_cast %108 : vector<16x8xf32> to vector<2x8x8xf32>
    %110 = vector.extract_strided_slice %30 {offsets = [0, 88], sizes = [16, 8], strides = [1, 1]} : vector<16x96xf32> to vector<16x8xf32>
    %111 = vector.shape_cast %110 : vector<16x8xf32> to vector<2x8x8xf32>
    "tpu.trace_start"() <{level = 10 : i32, message = "bqd,bkd->bqk"}> : () -> ()
    %cst_39 = arith.constant dense<0.000000e+00> : vector<2x8x8xf32>
    %112 = tpu.matmul %107, %109, %cst_39 {dimension_numbers = #tpu.dot_dimension_numbers<[2], [2], [1], [1], [0, 0, 0, 1, 1, 1], [0], [0]>} : vector<2x8x8xf32>, vector<2x8x8xf32>, vector<2x8x8xf32> -> vector<2x8x8xf32>
    "tpu.trace_stop"() : () -> ()
    %cst_40 = arith.constant 0.353553385 : f32
    %113 = vector.broadcast %cst_40 : f32 to vector<2x8x8xf32>
    %114 = arith.mulf %112, %113 : vector<2x8x8xf32>
    %cst_41 = arith.constant dense<0xFF800000> : vector<2x8xf32>
    %115 = vector.multi_reduction <maximumf>, %114, %cst_41 [2] : vector<2x8x8xf32> to vector<2x8xf32>
    %116 = vector.shape_cast %115 : vector<2x8xf32> to vector<2x8x1xf32>
    %117 = vector.broadcast %116 : vector<2x8x1xf32> to vector<2x8x8xf32>
    %118 = arith.subf %114, %117 : vector<2x8x8xf32>
    %119 = math.exp %118 : vector<2x8x8xf32>
    %cst_42 = arith.constant dense<0.000000e+00> : vector<2x8xf32>
    %120 = vector.multi_reduction <add>, %119, %cst_42 [2] : vector<2x8x8xf32> to vector<2x8xf32>
    %121 = vector.shape_cast %120 : vector<2x8xf32> to vector<2x8x1xf32>
    %122 = tpu.reciprocal %121 : vector<2x8x1xf32> -> vector<2x8x1xf32>
    %123 = vector.broadcast %122 : vector<2x8x1xf32> to vector<2x8x8xf32>
    %124 = arith.mulf %119, %123 : vector<2x8x8xf32>
    "tpu.trace_start"() <{level = 10 : i32, message = "bqk,bkd->bqd"}> : () -> ()
    %cst_43 = arith.constant dense<0.000000e+00> : vector<2x8x8xf32>
    %125 = tpu.matmul %124, %111, %cst_43 {dimension_numbers = #tpu.dot_dimension_numbers<[2], [1], [1], [2], [0, 0, 0, 1, 1, 2], [0], [0]>} : vector<2x8x8xf32>, vector<2x8x8xf32>, vector<2x8x8xf32> -> vector<2x8x8xf32>
    "tpu.trace_stop"() : () -> ()
    %c24 = arith.constant 24 : index
    %c0_44 = arith.constant 0 : index
    %126 = vector.load %arg6[%c24, %c0_44] : memref<32x32xf32, #tpu.memory_space<vmem>>, vector<8x32xf32>
    %127 = vector.shape_cast %125 : vector<2x8x8xf32> to vector<16x8xf32>
    %cst_45 = arith.constant dense<0.000000e+00> : vector<16x32xf32>
    %128 = tpu.matmul %127, %126, %cst_45 {dimension_numbers = #tpu.dot_dimension_numbers<[1], [0], [0], [1], [0, 0, 1, 1], [], []>} : vector<16x8xf32>, vector<8x32xf32>, vector<16x32xf32> -> vector<16x32xf32>
    %129 = arith.addf %105, %128 : vector<16x32xf32>
    %c0_46 = arith.constant 0 : index
    %c0_47 = arith.constant 0 : index
    %130 = vector.load %arg8[%c0_46, %c0_47] : memref<1x32xf32, #tpu.memory_space<vmem>>, vector<1x32xf32>
    %c0_48 = arith.constant 0 : index
    %c0_49 = arith.constant 0 : index
    %131 = vector.load %arg9[%c0_48, %c0_49] : memref<1x32xf32, #tpu.memory_space<vmem>>, vector<1x32xf32>
    %cst_50 = arith.constant dense<0.000000e+00> : vector<16xf32>
    %132 = vector.multi_reduction <add>, %129, %cst_50 [1] : vector<16x32xf32> to vector<16xf32>
    %133 = vector.shape_cast %132 : vector<16xf32> to vector<16x1xf32>
    %134 = arith.mulf %129, %129 : vector<16x32xf32>
    %cst_51 = arith.constant dense<0.000000e+00> : vector<16xf32>
    %135 = vector.multi_reduction <add>, %134, %cst_51 [1] : vector<16x32xf32> to vector<16xf32>
    %136 = vector.shape_cast %135 : vector<16xf32> to vector<16x1xf32>
    %cst_52 = arith.constant 3.125000e-02 : f32
    %137 = vector.broadcast %cst_52 : f32 to vector<16x1xf32>
    %138 = arith.mulf %133, %137 : vector<16x1xf32>
    %cst_53 = arith.constant 3.125000e-02 : f32
    %139 = vector.broadcast %cst_53 : f32 to vector<16x1xf32>
    %140 = arith.mulf %136, %139 : vector<16x1xf32>
    %141 = arith.mulf %138, %138 : vector<16x1xf32>
    %142 = arith.subf %140, %141 : vector<16x1xf32>
    %143 = vector.broadcast %138 : vector<16x1xf32> to vector<16x32xf32>
    %144 = arith.subf %129, %143 : vector<16x32xf32>
    %cst_54 = arith.constant 9.99999974E-6 : f32
    %145 = vector.broadcast %cst_54 : f32 to vector<16x1xf32>
    %146 = arith.addf %142, %145 : vector<16x1xf32>
    %147 = math.rsqrt %146 : vector<16x1xf32>
    %148 = vector.broadcast %147 : vector<16x1xf32> to vector<16x32xf32>
    %149 = arith.mulf %144, %148 : vector<16x32xf32>
    %150 = vector.broadcast %130 : vector<1x32xf32> to vector<16x32xf32>
    %151 = arith.mulf %149, %150 : vector<16x32xf32>
    %152 = vector.broadcast %131 : vector<1x32xf32> to vector<16x32xf32>
    %153 = arith.addf %151, %152 : vector<16x32xf32>
    %c0_55 = arith.constant 0 : index
    %c0_56 = arith.constant 0 : index
    %154 = vector.load %arg10[%c0_55, %c0_56] : memref<32x64xf32, #tpu.memory_space<vmem>>, vector<32x64xf32>
    %cst_57 = arith.constant dense<0.000000e+00> : vector<16x64xf32>
    %155 = tpu.matmul %153, %154, %cst_57 {dimension_numbers = #tpu.dot_dimension_numbers<[1], [0], [0], [1], [0, 0, 1, 1], [], []>} : vector<16x32xf32>, vector<32x64xf32>, vector<16x64xf32> -> vector<16x64xf32>
    %c0_58 = arith.constant 0 : index
    %c0_59 = arith.constant 0 : index
    %156 = vector.load %arg11[%c0_58, %c0_59] : memref<1x64xf32, #tpu.memory_space<vmem>>, vector<1x64xf32>
    %157 = vector.broadcast %156 : vector<1x64xf32> to vector<16x64xf32>
    %158 = arith.addf %155, %157 : vector<16x64xf32>
    %cst_60 = arith.constant 5.000000e-01 : f32
    %159 = vector.broadcast %cst_60 : f32 to vector<16x64xf32>
    %160 = arith.mulf %159, %158 : vector<16x64xf32>
    %cst_61 = arith.constant 0.707106769 : f32
    %161 = vector.broadcast %cst_61 : f32 to vector<16x64xf32>
    %162 = arith.mulf %158, %161 : vector<16x64xf32>
    %163 = math.erf %162 : vector<16x64xf32>
    %cst_62 = arith.constant 1.000000e+00 : f32
    %164 = vector.broadcast %cst_62 : f32 to vector<16x64xf32>
    %165 = arith.addf %164, %163 : vector<16x64xf32>
    %166 = arith.mulf %160, %165 : vector<16x64xf32>
    %c0_63 = arith.constant 0 : index
    %c0_64 = arith.constant 0 : index
    %167 = vector.load %arg12[%c0_63, %c0_64] : memref<64x32xf32, #tpu.memory_space<vmem>>, vector<64x32xf32>
    %cst_65 = arith.constant dense<0.000000e+00> : vector<16x32xf32>
    %168 = tpu.matmul %166, %167, %cst_65 {dimension_numbers = #tpu.dot_dimension_numbers<[1], [0], [0], [1], [0, 0, 1, 1], [], []>} : vector<16x64xf32>, vector<64x32xf32>, vector<16x32xf32> -> vector<16x32xf32>
    %c0_66 = arith.constant 0 : index
    %c0_67 = arith.constant 0 : index
    %169 = vector.load %arg13[%c0_66, %c0_67] : memref<1x32xf32, #tpu.memory_space<vmem>>, vector<1x32xf32>
    %170 = vector.broadcast %169 : vector<1x32xf32> to vector<16x32xf32>
    %171 = arith.addf %168, %170 : vector<16x32xf32>
    %172 = arith.addf %129, %171 : vector<16x32xf32>
    %173 = vector.shape_cast %172 : vector<16x32xf32> to vector<2x8x32xf32>
    %c0_68 = arith.constant 0 : index
    %c0_69 = arith.constant 0 : index
    %c0_70 = arith.constant 0 : index
    %174 = vector.load %arg14[%c0_68, %c0_69, %c0_70] : memref<2x8x32xf32, #tpu.memory_space<vmem>>, vector<2x8x32xf32>
    tpu.vector_store %arg14[%c0_68, %c0_69, %c0_70], %173 {strides = array<i32>} : memref<2x8x32xf32, #tpu.memory_space<vmem>>, vector<2x8x32xf32>,
    return
  }
  func.func @transform_0(%arg0: i32) -> (i32, i32, i32) {
    %c0_i32 = arith.constant 0 : i32
    %c0_i32_0 = arith.constant 0 : i32
    %c0_i32_1 = arith.constant 0 : i32
    %c0_i32_2 = arith.constant 0 : i32
    return %c0_i32, %c0_i32_0, %c0_i32_1 : i32, i32, i32
  }
  func.func @transform_1(%arg0: i32) -> (i32, i32) {
    %c0_i32 = arith.constant 0 : i32
    %c0_i32_0 = arith.constant 0 : i32
    %c0_i32_1 = arith.constant 0 : i32
    return %c0_i32, %c0_i32_0 : i32, i32
  }
  func.func @transform_2(%arg0: i32) -> (i32, i32) {
    %c0_i32 = arith.constant 0 : i32
    %c0_i32_0 = arith.constant 0 : i32
    %c0_i32_1 = arith.constant 0 : i32
    return %c0_i32, %c0_i32_0 : i32, i32
  }
  func.func @transform_3(%arg0: i32) -> (i32, i32) {
    %c0_i32 = arith.constant 0 : i32
    %c0_i32_0 = arith.constant 0 : i32
    %c0_i32_1 = arith.constant 0 : i32
    return %c0_i32, %c0_i32_0 : i32, i32
  }
  func.func @transform_4(%arg0: i32) -> (i32, i32) {
    %c0_i32 = arith.constant 0 : i32
    %c0_i32_0 = arith.constant 0 : i32
    %c0_i32_1 = arith.constant 0 : i32
    return %c0_i32, %c0_i32_0 : i32, i32
  }
  func.func @transform_5(%arg0: i32) -> (i32, i32) {
    %c0_i32 = arith.constant 0 : i32
    %c0_i32_0 = arith.constant 0 : i32
    %c0_i32_1 = arith.constant 0 : i32
    return %c0_i32, %c0_i32_0 : i32, i32
  }
  func.func @transform_6(%arg0: i32) -> (i32, i32) {
    %c0_i32 = arith.constant 0 : i32
    %c0_i32_0 = arith.constant 0 : i32
    %c0_i32_1 = arith.constant 0 : i32
    return %c0_i32, %c0_i32_0 : i32, i32
  }
  func.func @transform_7(%arg0: i32) -> (i32, i32) {
    %c0_i32 = arith.constant 0 : i32
    %c0_i32_0 = arith.constant 0 : i32
    %c0_i32_1 = arith.constant 0 : i32
    return %c0_i32, %c0_i32_0 : i32, i32
  }
  func.func @transform_8(%arg0: i32) -> (i32, i32) {
    %c0_i32 = arith.constant 0 : i32
    %c0_i32_0 = arith.constant 0 : i32
    %c0_i32_1 = arith.constant 0 : i32
    return %c0_i32, %c0_i32_0 : i32, i32
  }
  func.func @transform_9(%arg0: i32) -> (i32, i32) {
    %c0_i32 = arith.constant 0 : i32
    %c0_i32_0 = arith.constant 0 : i32
    %c0_i32_1 = arith.constant 0 : i32
    return %c0_i32, %c0_i32_0 : i32, i32
  }
  func.func @transform_10(%arg0: i32) -> (i32, i32) {
    %c0_i32 = arith.constant 0 : i32
    %c0_i32_0 = arith.constant 0 : i32
    %c0_i32_1 = arith.constant 0 : i32
    return %c0_i32, %c0_i32_0 : i32, i32
  }
  func.func @transform_11(%arg0: i32) -> (i32, i32) {
    %c0_i32 = arith.constant 0 : i32
    %c0_i32_0 = arith.constant 0 : i32
    %c0_i32_1 = arith.constant 0 : i32
    return %c0_i32, %c0_i32_0 : i32, i32
  }
  func.func @transform_12(%arg0: i32) -> (i32, i32) {
    %c0_i32 = arith.constant 0 : i32
    %c0_i32_0 = arith.constant 0 : i32
    %c0_i32_1 = arith.constant 0 : i32
    return %c0_i32, %c0_i32_0 : i32, i32
  }
  func.func @transform_13(%arg0: i32) -> (i32, i32, i32) {
    %c0_i32 = arith.constant 0 : i32
    %c0_i32_0 = arith.constant 0 : i32
    %c0_i32_1 = arith.constant 0 : i32
    %c0_i32_2 = arith.constant 0 : i32
    return %c0_i32, %c0_i32_0, %c0_i32_1 : i32, i32, i32
  }
}

</mosaic_0001>

<llo_original>
// kernel: tpu_custom_call.1
$region0: #{tpu_custom_call.1}
  #allocation0 [shape = 'u32[]', space=smem, size = 0x4, offset = 0x4, fixed_abs, tag = 'smem constant byte address 0x4 - core index']
  #allocation1 [shape = 'u32[144,128]{1,0:T(1,128)}', space=vmem, size = 0x12000, scoped, tag = 'internal scratch']
  %s0 = inlined_call_operand.hbm [shape: f32[2,8,32], index: 0, kind: input, shape index: {}]
  %s1 = inlined_call_operand.vmem [shape: f32[1,32], index: 1, kind: input, shape index: {}]
  %s2 = inlined_call_operand.vmem [shape: f32[1,32], index: 2, kind: input, shape index: {}]
  %s3 = inlined_call_operand.vmem [shape: f32[32,96], index: 3, kind: input, shape index: {}]
  %s4 = inlined_call_operand.vmem [shape: f32[1,96], index: 4, kind: input, shape index: {}]
  %s5 = inlined_call_operand.vmem [shape: f32[32,32], index: 5, kind: input, shape index: {}]
  %s6 = inlined_call_operand.vmem [shape: f32[1,32], index: 6, kind: input, shape index: {}]
  %s7 = inlined_call_operand.vmem [shape: f32[1,32], index: 7, kind: input, shape index: {}]
  %s8 = inlined_call_operand.vmem [shape: f32[1,32], index: 8, kind: input, shape index: {}]
  %s9 = inlined_call_operand.vmem [shape: f32[32,64], index: 9, kind: input, shape index: {}]
  %s10 = inlined_call_operand.vmem [shape: f32[1,64], index: 10, kind: input, shape index: {}]
  %s11 = inlined_call_operand.vmem [shape: f32[64,32], index: 11, kind: input, shape index: {}]
  %s12 = inlined_call_operand.vmem [shape: f32[1,32], index: 12, kind: input, shape index: {}]
  %s13 = inlined_call_operand.hbm [shape: f32[2,8,32], index: 13, kind: output, shape index: {}]
  %s14 = sld [smem:[#allocation0]]
  $region66: #{tpu_custom_call.1} parent=0
    _
  %s16 = ssub.s32 1, %s14
  %s17 = scalar_select 0, %s16, %s14
  $region1: #{tpu_custom_call.1} parent=0
    #allocation2 [shape = 'u8[8192]{0}', space=vmem, size = 0x2000, scoped, tag = 'input window, operand 0, single buffered']
    #allocation3 [shape = 's32[1]{0}', space=sflag, size = 0x4, scoped, tag = 'scoped memory for tpu_custom_call.1']
    #allocation4 [shape = 's32[1]{0}', space=sflag, size = 0x4, scoped, tag = 'scoped memory for tpu_custom_call.1']
    #allocation5 [shape = 'u8[8192]{0}', space=vmem, size = 0x2000, scoped, tag = 'output window, operand 0, single buffered']
    %18 = vsyncpa [#allocation3], 0
    %19 = vsyncpa [#allocation4], 0
    // Predicated region
    $region2: #{tpu_custom_call.1} parent=1 // pred_check
      _
    $region3: #{tpu_custom_call.1} parent=1 // pred_check_branch
      %21 = sbr.rel (0) target = $region5
    $region4: #{tpu_custom_call.1} parent=1 // pred_region
      %s23 = ssub.s32 256, 256
      %24 = vsyncadd [#allocation3], %s23
      %s25 = sshll.u32 [#allocation2], 4
      %s26 = int_to_ptr.vmem [resolvable:$true] %s25
      %31 = dma.hbm_to_vmem [thread:$0]  %s0, 256, %s26, [#allocation3], 128, 128, 8
    $region5: #{tpu_custom_call.1} parent=1 // pred_fallthru
      _
    // Predicated region
    $region6: #{tpu_custom_call.1} parent=1 // pred_check
      _
    $region7: #{tpu_custom_call.1} parent=1 // pred_check_branch
      %33 = sbr.rel (0) target = $region9
    $region8: #{tpu_custom_call.1} parent=1 // pred_region
      _
    $region9: #{tpu_custom_call.1} parent=1 // pred_fallthru
      _
    // Predicated region
    $region10: #{tpu_custom_call.1} parent=1 // pred_check
      _
    $region11: #{tpu_custom_call.1} parent=1 // pred_check_branch
      %35 = sbr.rel (0) target = $region13
    $region12: #{tpu_custom_call.1} parent=1 // pred_region
      _
    $region13: #{tpu_custom_call.1} parent=1 // pred_fallthru
      _
    // Predicated region
    $region14: #{tpu_custom_call.1} parent=1 // pred_check
      _
    $region15: #{tpu_custom_call.1} parent=1 // pred_check_branch
      %37 = sbr.rel (0) target = $region17
    $region16: #{tpu_custom_call.1} parent=1 // pred_region
      _
    $region17: #{tpu_custom_call.1} parent=1 // pred_fallthru
      _
    // Predicated region
    $region18: #{tpu_custom_call.1} parent=1 // pred_check
      _
    $region19: #{tpu_custom_call.1} parent=1 // pred_check_branch
      %39 = sbr.rel (0) target = $region21
    $region20: #{tpu_custom_call.1} parent=1 // pred_region
      _
    $region21: #{tpu_custom_call.1} parent=1 // pred_fallthru
      _
    // Predicated region
    $region22: #{tpu_custom_call.1} parent=1 // pred_check
      _
    $region23: #{tpu_custom_call.1} parent=1 // pred_check_branch
      %41 = sbr.rel (0) target = $region25
    $region24: #{tpu_custom_call.1} parent=1 // pred_region
      _
    $region25: #{tpu_custom_call.1} parent=1 // pred_fallthru
      _
    // Predicated region
    $region26: #{tpu_custom_call.1} parent=1 // pred_check
      _
    $region27: #{tpu_custom_call.1} parent=1 // pred_check_branch
      %43 = sbr.rel (0) target = $region29
    $region28: #{tpu_custom_call.1} parent=1 // pred_region
      _
    $region29: #{tpu_custom_call.1} parent=1 // pred_fallthru
      _
    // Predicated region
    $region30: #{tpu_custom_call.1} parent=1 // pred_check
      _
    $region31: #{tpu_custom_call.1} parent=1 // pred_check_branch
      %45 = sbr.rel (0) target = $region33
    $region32: #{tpu_custom_call.1} parent=1 // pred_region
      _
    $region33: #{tpu_custom_call.1} parent=1 // pred_fallthru
      _
    // Predicated region
    $region34: #{tpu_custom_call.1} parent=1 // pred_check
      _
    $region35: #{tpu_custom_call.1} parent=1 // pred_check_branch
      %47 = sbr.rel (0) target = $region37
    $region36: #{tpu_custom_call.1} parent=1 // pred_region
      _
    $region37: #{tpu_custom_call.1} parent=1 // pred_fallthru
      _
    // Predicated region
    $region38: #{tpu_custom_call.1} parent=1 // pred_check
      _
    $region39: #{tpu_custom_call.1} parent=1 // pred_check_branch
      %49 = sbr.rel (0) target = $region41
    $region40: #{tpu_custom_call.1} parent=1 // pred_region
      _
    $region41: #{tpu_custom_call.1} parent=1 // pred_fallthru
      _
    // Predicated region
    $region42: #{tpu_custom_call.1} parent=1 // pred_check
      _
    $region43: #{tpu_custom_call.1} parent=1 // pred_check_branch
      %51 = sbr.rel (0) target = $region45
    $region44: #{tpu_custom_call.1} parent=1 // pred_region
      _
    $region45: #{tpu_custom_call.1} parent=1 // pred_fallthru
      _
    // Predicated region
    $region46: #{tpu_custom_call.1} parent=1 // pred_check
      _
    $region47: #{tpu_custom_call.1} parent=1 // pred_check_branch
      %53 = sbr.rel (0) target = $region49
    $region48: #{tpu_custom_call.1} parent=1 // pred_region
      _
    $region49: #{tpu_custom_call.1} parent=1 // pred_fallthru
      _
    // Predicated region
    $region50: #{tpu_custom_call.1} parent=1 // pred_check
      _
    $region51: #{tpu_custom_call.1} parent=1 // pred_check_branch
      %55 = sbr.rel (0) target = $region53
    $region52: #{tpu_custom_call.1} parent=1 // pred_region
      _
    $region53: #{tpu_custom_call.1} parent=1 // pred_fallthru
      _
    // Predicated region
    $region54: #{tpu_custom_call.1} parent=1 // pred_check
      _
    $region55: #{tpu_custom_call.1} parent=1 // pred_check_branch
      %57 = sbr.rel (0) target = $region57
    $region56: #{tpu_custom_call.1} parent=1 // pred_region
      %58 = dma.done [#allocation3], 256
    $region57: #{tpu_custom_call.1} parent=1 // pred_fallthru
      _
    %v59 = vld [vmem:[#allocation2] sm:$0xff]
    %v60 = vld [vmem:[#allocation2 + $0x8] sm:$0xff]
    %v61 = vld [vmem:[%s1] sm:$0x1]
    %v62 = vld [vmem:[%s2] sm:$0x1]
    %vm63 = vcmask 261120
    %v64 = vsel %vm63, %v59, 0.0
    %65 = vadd.xlane.f32.xlu0 %v64
    %v66 = vpop.xlane.xlu0 %65
    %v67 = vsel %vm63, %v60, 0.0
    %68 = vadd.xlane.f32.xlu0 %v67
    %v69 = vpop.xlane.xlu0 %68
    %v70 = vmul.f32 %v59, %v59
    %v71 = vmul.f32 %v60, %v60
    %v72 = vsel %vm63, %v70, 0.0
    %73 = vadd.xlane.f32.xlu0 %v72
    %v74 = vpop.xlane.xlu0 %73
    %v75 = vsel %vm63, %v71, 0.0
    %76 = vadd.xlane.f32.xlu0 %v75
    %v77 = vpop.xlane.xlu0 %76
    %v78 = vmul.f32 %v66, 0.03125
    %v79 = vmul.f32 %v69, 0.03125
    %v80 = vmul.f32 %v74, 0.03125
    %v81 = vmul.f32 %v77, 0.03125
    %v82 = vmul.f32 %v78, %v78
    %v83 = vmul.f32 %v79, %v79
    %v84 = vsub.f32 %v80, %v82
    %v85 = vsub.f32 %v81, %v83
    %v86 = vsub.f32 %v59, %v78
    %v87 = vsub.f32 %v60, %v79
    %v88 = vadd.f32 %v84, 1e-05
    %v89 = vadd.f32 %v85, 1e-05
    %v90 = vrsqrt.pop %v88
    %v91 = vrsqrt.pop %v89
    %v92 = vmul.f32 %v86, %v90
    %v93 = vmul.f32 %v87, %v91
    %v95 = vlaneseq
    %v96 = vshrl.u32 %v95, 7
    %v97 = vsub.s32 0, %v96
    %v98 = vrot.slane %v61, %v97
    %v100 = vmul.f32 %v92, %v98
    %v101 = vmul.f32 %v93, %v98
    %v103 = vlaneseq
    %v104 = vshrl.u32 %v103, 7
    %v105 = vsub.s32 0, %v104
    %v106 = vrot.slane %v62, %v105
    %v108 = vadd.f32 %v100, %v106
    %v109 = vadd.f32 %v101, %v106
    %v110 = vld [vmem:[%s3] sm:$0xff]
    %v111 = vld [vmem:[%s3 + $0x8] sm:$0xff]
    %v112 = vld [vmem:[%s3 + $0x10] sm:$0xff]
    %v113 = vld [vmem:[%s3 + $0x18] sm:$0xff]
    %v114 = vld [vmem:[%s4] sm:$0x1]
    %v116 = vlaneseq
    %v117 = vshrl.u32 %v116, 7
    %v118 = vsub.s32 0, %v117
    %v119 = vrot.slane %v114, %v118
    %v122 = vsel %vm63, %v108, 0
    %v125 = vsel %vm63, %v109, 0
    %127 = vmatprep.subr.mxu0 0.0
    %128 = vmatpush1.msra.mxu0 %v110
    %129 = vmatprep.subr.mxu0 0.0
    %130 = vmatpush1.msra.mxu0 %v111
    %131 = vmatprep.subr.mxu0 0.0
    %132 = vmatpush1.msra.mxu0 %v112
    %133 = vmatprep.subr.mxu0 0.0
    %134 = vmatpush1.msra.mxu0 %v113
    %135 = vmatprep.subr.mxu0 0.0
    %136 = vmatpush1.msra.mxu0 0.0
    %137 = vmatprep.subr.mxu0 0.0
    %138 = vmatpush1.msra.mxu0 0.0
    %139 = vmatprep.subr.mxu0 0.0
    %140 = vmatpush1.msra.mxu0 0.0
    %141 = vmatprep.subr.mxu0 0.0
    %142 = vmatpush1.msra.mxu0 0.0
    %143 = vmatprep.subr.mxu0 0.0
    %144 = vmatpush1.msra.mxu0 0.0
    %145 = vmatprep.subr.mxu0 0.0
    %146 = vmatpush1.msra.mxu0 0.0
    %147 = vmatprep.subr.mxu0 0.0
    %148 = vmatpush1.msra.mxu0 0.0
    %149 = vmatprep.subr.mxu0 0.0
    %150 = vmatpush1.msra.mxu0 0.0
    %151 = vmatprep.subr.mxu0 0.0
    %152 = vmatpush1.msra.mxu0 0.0
    %153 = vmatprep.subr.mxu0 0.0
    %154 = vmatpush1.msra.mxu0 0.0
    %155 = vmatprep.subr.mxu0 0.0
    %156 = vmatpush1.msra.mxu0 0.0
    %157 = vmatprep.subr.mxu0 0.0
    %158 = vmatpush1.msra.mxu0 0.0
    %159 = vmatprep.subr.mxu0 0.0
    %160 = vmatpush1.msra.mxu0 0.0
    %161 = vmatprep.subr.mxu0 0.0
    %162 = vmatpush1.msra.mxu0 0.0
    %163 = vmatprep.subr.mxu0 0.0
    %164 = vmatpush1.msra.mxu0 0.0
    %165 = vmatprep.subr.mxu0 0.0
    %166 = vmatpush1.msra.mxu0 0.0
    %167 = vmatprep.subr.mxu0 0.0
    %168 = vmatpush1.msra.mxu0 0.0
    %169 = vmatprep.subr.mxu0 0.0
    %170 = vmatpush1.msra.mxu0 0.0
    %171 = vmatprep.subr.mxu0 0.0
    %172 = vmatpush1.msra.mxu0 0.0
    %173 = vmatprep.subr.mxu0 0.0
    %174 = vmatpush1.msra.mxu0 0.0
    %175 = vmatprep.subr.mxu0 0.0
    %176 = vmatpush1.msra.mxu0 0.0
    %177 = vmatprep.subr.mxu0 0.0
    %178 = vmatpush1.msra.mxu0 0.0
    %179 = vmatprep.subr.mxu0 0.0
    %180 = vmatpush1.msra.mxu0 0.0
    %181 = vmatprep.subr.mxu0 0.0
    %182 = vmatpush1.msra.mxu0 0.0
    %183 = vmatprep.subr.mxu0 0.0
    %184 = vmatpush1.msra.mxu0 0.0
    %185 = vmatprep.subr.mxu0 0.0
    %186 = vmatpush1.msra.mxu0 0.0
    %187 = vmatprep.subr.mxu0 0.0
    %188 = vmatpush1.msra.mxu0 0.0
    %189 = vmatprep.subr.mxu0 0.0
    %190 = vmatpush1.msra.mxu0 0.0
    %191 = vmatprep.mubr.f32.mxu0 0.0
    %192 = vmatmul.mubr.f32.gmra.mrb[0].mxu0 %v122
    %v193 = vpop.f32.mrb[0].mxu0
    %v194 = vadd.f32 %v119, %v193
    %v195 = vpop.f32.mrb[0].mxu0
    %196 = vmatprep.mubr.f32.mxu0 0.0
    %197 = vmatmul.mubr.f32.gmra.mrb[0].mxu0 %v125
    %v198 = vpop.f32.mrb[0].mxu0
    %v199 = vadd.f32 %v119, %v198
    %v200 = vpop.f32.mrb[0].mxu0
    %201 = vdwg.mxu0
    %v202 = vld [vmem:[%s6] sm:$0x1]
    %v204 = vlaneseq
    %v205 = vshrl.u32 %v204, 7
    %v206 = vsub.s32 0, %v205
    %v207 = vrot.slane %v202, %v206
    %v209 = vadd.f32 %v59, %v207
    %v210 = vadd.f32 %v60, %v207
    %212 = vrot.lane.b32.xlu0 %v194, 96
    %v213 = vpop.permute.xlu0 %212
    %vm214 = vcmask 64512
    %v215 = vsel %vm214, %v194, 0
    %v217 = vsel %vm214, %v213, 0
    %219 = vmatprep.subr.mxu0 0.0
    %220 = vmatpush1.xpose.msra.mxu0 %v217
    %221 = vmatprep.subr.mxu0 0.0
    %222 = vmatpush1.xpose.msra.mxu0 0.0
    %223 = vmatprep.subr.mxu0 0.0
    %224 = vmatpush1.xpose.msra.mxu0 0.0
    %225 = vmatprep.subr.mxu0 0.0
    %226 = vmatpush1.xpose.msra.mxu0 0.0
    %227 = vmatprep.subr.mxu0 0.0
    %228 = vmatpush1.xpose.msra.mxu0 0.0
    %229 = vmatprep.subr.mxu0 0.0
    %230 = vmatpush1.xpose.msra.mxu0 0.0
    %231 = vmatprep.subr.mxu0 0.0
    %232 = vmatpush1.xpose.msra.mxu0 0.0
    %233 = vmatprep.subr.mxu0 0.0
    %234 = vmatpush1.xpose.msra.mxu0 0.0
    %235 = vmatprep.subr.mxu0 0.0
    %236 = vmatpush1.xpose.msra.mxu0 0.0
    %237 = vmatprep.subr.mxu0 0.0
    %238 = vmatpush1.xpose.msra.mxu0 0.0
    %239 = vmatprep.subr.mxu0 0.0
    %240 = vmatpush1.xpose.msra.mxu0 0.0
    %241 = vmatprep.subr.mxu0 0.0
    %242 = vmatpush1.xpose.msra.mxu0 0.0
    %243 = vmatprep.subr.mxu0 0.0
    %244 = vmatpush1.xpose.msra.mxu0 0.0
    %245 = vmatprep.subr.mxu0 0.0
    %246 = vmatpush1.xpose.msra.mxu0 0.0
    %247 = vmatprep.subr.mxu0 0.0
    %248 = vmatpush1.xpose.msra.mxu0 0.0
    %249 = vmatprep.subr.mxu0 0.0
    %250 = vmatpush1.xpose.msra.mxu0 0.0
    %251 = vmatprep.subr.mxu0 0.0
    %252 = vmatpush1.xpose.msra.mxu0 0.0
    %253 = vmatprep.subr.mxu0 0.0
    %254 = vmatpush1.xpose.msra.mxu0 0.0
    %255 = vmatprep.subr.mxu0 0.0
    %256 = vmatpush1.xpose.msra.mxu0 0.0
    %257 = vmatprep.subr.mxu0 0.0
    %258 = vmatpush1.xpose.msra.mxu0 0.0
    %259 = vmatprep.subr.mxu0 0.0
    %260 = vmatpush1.xpose.msra.mxu0 0.0
    %261 = vmatprep.subr.mxu0 0.0
    %262 = vmatpush1.xpose.msra.mxu0 0.0
    %263 = vmatprep.subr.mxu0 0.0
    %264 = vmatpush1.xpose.msra.mxu0 0.0
    %265 = vmatprep.subr.mxu0 0.0
    %266 = vmatpush1.xpose.msra.mxu0 0.0
    %267 = vmatprep.subr.mxu0 0.0
    %268 = vmatpush1.xpose.msra.mxu0 0.0
    %269 = vmatprep.subr.mxu0 0.0
    %270 = vmatpush1.xpose.msra.mxu0 0.0
    %271 = vmatprep.subr.mxu0 0.0
    %272 = vmatpush1.xpose.msra.mxu0 0.0
    %273 = vmatprep.subr.mxu0 0.0
    %274 = vmatpush1.xpose.msra.mxu0 0.0
    %275 = vmatprep.subr.mxu0 0.0
    %276 = vmatpush1.xpose.msra.mxu0 0.0
    %277 = vmatprep.subr.mxu0 0.0
    %278 = vmatpush1.xpose.msra.mxu0 0.0
    %279 = vmatprep.subr.mxu0 0.0
    %280 = vmatpush1.xpose.msra.mxu0 0.0
    %281 = vmatprep.subr.mxu0 0.0
    %282 = vmatpush1.xpose.msra.mxu0 0.0
    %283 = vmatprep.mubr.f32.mxu0 0.0
    %284 = vmatmul.mubr.f32.gmra.mrb[0].mxu0 %v215
    %v285 = vpop.f32.mrb[0].mxu0
    %v286 = vadd.f32 0.0, %v285
    %v287 = vpop.f32.mrb[0].mxu0
    %288 = vdwg.mxu0
    %290 = vrot.lane.b32.xlu0 %v199, 96
    %v291 = vpop.permute.xlu0 %290
    %v292 = vsel %vm214, %v199, 0
    %v294 = vsel %vm214, %v291, 0
    %296 = vmatprep.subr.mxu0 0.0
    %297 = vmatpush1.xpose.msra.mxu0 %v294
    %298 = vmatprep.subr.mxu0 0.0
    %299 = vmatpush1.xpose.msra.mxu0 0.0
    %300 = vmatprep.subr.mxu0 0.0
    %301 = vmatpush1.xpose.msra.mxu0 0.0
    %302 = vmatprep.subr.mxu0 0.0
    %303 = vmatpush1.xpose.msra.mxu0 0.0
    %304 = vmatprep.subr.mxu0 0.0
    %305 = vmatpush1.xpose.msra.mxu0 0.0
    %306 = vmatprep.subr.mxu0 0.0
    %307 = vmatpush1.xpose.msra.mxu0 0.0
    %308 = vmatprep.subr.mxu0 0.0
    %309 = vmatpush1.xpose.msra.mxu0 0.0
    %310 = vmatprep.subr.mxu0 0.0
    %311 = vmatpush1.xpose.msra.mxu0 0.0
    %312 = vmatprep.subr.mxu0 0.0
    %313 = vmatpush1.xpose.msra.mxu0 0.0
    %314 = vmatprep.subr.mxu0 0.0
    %315 = vmatpush1.xpose.msra.mxu0 0.0
    %316 = vmatprep.subr.mxu0 0.0
    %317 = vmatpush1.xpose.msra.mxu0 0.0
    %318 = vmatprep.subr.mxu0 0.0
    %319 = vmatpush1.xpose.msra.mxu0 0.0
    %320 = vmatprep.subr.mxu0 0.0
    %321 = vmatpush1.xpose.msra.mxu0 0.0
    %322 = vmatprep.subr.mxu0 0.0
    %323 = vmatpush1.xpose.msra.mxu0 0.0
    %324 = vmatprep.subr.mxu0 0.0
    %325 = vmatpush1.xpose.msra.mxu0 0.0
    %326 = vmatprep.subr.mxu0 0.0
    %327 = vmatpush1.xpose.msra.mxu0 0.0
    %328 = vmatprep.subr.mxu0 0.0
    %329 = vmatpush1.xpose.msra.mxu0 0.0
    %330 = vmatprep.subr.mxu0 0.0
    %331 = vmatpush1.xpose.msra.mxu0 0.0
    %332 = vmatprep.subr.mxu0 0.0
    %333 = vmatpush1.xpose.msra.mxu0 0.0
    %334 = vmatprep.subr.mxu0 0.0
    %335 = vmatpush1.xpose.msra.mxu0 0.0
    %336 = vmatprep.subr.mxu0 0.0
    %337 = vmatpush1.xpose.msra.mxu0 0.0
    %338 = vmatprep.subr.mxu0 0.0
    %339 = vmatpush1.xpose.msra.mxu0 0.0
    %340 = vmatprep.subr.mxu0 0.0
    %341 = vmatpush1.xpose.msra.mxu0 0.0
    %342 = vmatprep.subr.mxu0 0.0
    %343 = vmatpush1.xpose.msra.mxu0 0.0
    %344 = vmatprep.subr.mxu0 0.0
    %345 = vmatpush1.xpose.msra.mxu0 0.0
    %346 = vmatprep.subr.mxu0 0.0
    %347 = vmatpush1.xpose.msra.mxu0 0.0
    %348 = vmatprep.subr.mxu0 0.0
    %349 = vmatpush1.xpose.msra.mxu0 0.0
    %350 = vmatprep.subr.mxu0 0.0
    %351 = vmatpush1.xpose.msra.mxu0 0.0
    %352 = vmatprep.subr.mxu0 0.0
    %353 = vmatpush1.xpose.msra.mxu0 0.0
    %354 = vmatprep.subr.mxu0 0.0
    %355 = vmatpush1.xpose.msra.mxu0 0.0
    %356 = vmatprep.subr.mxu0 0.0
    %357 = vmatpush1.xpose.msra.mxu0 0.0
    %358 = vmatprep.subr.mxu0 0.0
    %359 = vmatpush1.xpose.msra.mxu0 0.0
    %360 = vmatprep.mubr.f32.mxu0 0.0
    %361 = vmatmul.mubr.f32.gmra.mrb[0].mxu0 %v292
    %v362 = vpop.f32.mrb[0].mxu0
    %v363 = vadd.f32 0.0, %v362
    %v364 = vpop.f32.mrb[0].mxu0
    %365 = vdwg.mxu0
    %v366 = vmul.f32 %v286, 0.35355338
    %v367 = vmul.f32 %v363, 0.35355338
    %v368 = vsel %vm214, %v366, -inf
    %369 = vmax.xlane.f32.xlu0 %v368
    %v370 = vpop.xlane.xlu0 %369
    %v371 = vsel %vm214, %v367, -inf
    %372 = vmax.xlane.f32.xlu0 %v371
    %v373 = vpop.xlane.xlu0 %372
    %v374 = vsub.f32 %v366, %v370
    %v375 = vsub.f32 %v367, %v373
    %v376 = vmul.f32 %v374, 1.442695
    %v377 = vpow.pop %v376
    %v378 = vmul.f32 %v375, 1.442695
    %v379 = vpow.pop %v378
    %v380 = vsel %vm214, %v377, 0.0
    %381 = vadd.xlane.f32.xlu0 %v380
    %v382 = vpop.xlane.xlu0 %381
    %v383 = vsel %vm214, %v379, 0.0
    %384 = vadd.xlane.f32.xlu0 %v383
    %v385 = vpop.xlane.xlu0 %384
    %v386 = vrcp.pop %v382
    %v387 = vrcp.pop %v385
    %v388 = vmul.f32 %v377, %v386
    %v389 = vmul.f32 %v379, %v387
    %390 = vrot.lane.b32.xlu0 %v194, 64
    %v391 = vpop.permute.xlu0 %390
    %v394 = vsel %vm214, %v388, 0
    %396 = vmatprep.subr.mxu0 0.0
    %397 = vmatpush1.msra.mxu0 %v391
    %398 = vmatprep.subr.mxu0 0.0
    %399 = vmatpush1.msra.mxu0 0.0
    %400 = vmatprep.subr.mxu0 0.0
    %401 = vmatpush1.msra.mxu0 0.0
    %402 = vmatprep.subr.mxu0 0.0
    %403 = vmatpush1.msra.mxu0 0.0
    %404 = vmatprep.subr.mxu0 0.0
    %405 = vmatpush1.msra.mxu0 0.0
    %406 = vmatprep.subr.mxu0 0.0
    %407 = vmatpush1.msra.mxu0 0.0
    %408 = vmatprep.subr.mxu0 0.0
    %409 = vmatpush1.msra.mxu0 0.0
    %410 = vmatprep.subr.mxu0 0.0
    %411 = vmatpush1.msra.mxu0 0.0
    %412 = vmatprep.subr.mxu0 0.0
    %413 = vmatpush1.msra.mxu0 0.0
    %414 = vmatprep.subr.mxu0 0.0
    %415 = vmatpush1.msra.mxu0 0.0
    %416 = vmatprep.subr.mxu0 0.0
    %417 = vmatpush1.msra.mxu0 0.0
    %418 = vmatprep.subr.mxu0 0.0
    %419 = vmatpush1.msra.mxu0 0.0
    %420 = vmatprep.subr.mxu0 0.0
    %421 = vmatpush1.msra.mxu0 0.0
    %422 = vmatprep.subr.mxu0 0.0
    %423 = vmatpush1.msra.mxu0 0.0
    %424 = vmatprep.subr.mxu0 0.0
    %425 = vmatpush1.msra.mxu0 0.0
    %426 = vmatprep.subr.mxu0 0.0
    %427 = vmatpush1.msra.mxu0 0.0
    %428 = vmatprep.subr.mxu0 0.0
    %429 = vmatpush1.msra.mxu0 0.0
    %430 = vmatprep.subr.mxu0 0.0
    %431 = vmatpush1.msra.mxu0 0.0
    %432 = vmatprep.subr.mxu0 0.0
    %433 = vmatpush1.msra.mxu0 0.0
    %434 = vmatprep.subr.mxu0 0.0
    %435 = vmatpush1.msra.mxu0 0.0
    %436 = vmatprep.subr.mxu0 0.0
    %437 = vmatpush1.msra.mxu0 0.0
    %438 = vmatprep.subr.mxu0 0.0
    %439 = vmatpush1.msra.mxu0 0.0
    %440 = vmatprep.subr.mxu0 0.0
    %441 = vmatpush1.msra.mxu0 0.0
    %442 = vmatprep.subr.mxu0 0.0
    %443 = vmatpush1.msra.mxu0 0.0
    %444 = vmatprep.subr.mxu0 0.0
    %445 = vmatpush1.msra.mxu0 0.0
    %446 = vmatprep.subr.mxu0 0.0
    %447 = vmatpush1.msra.mxu0 0.0
    %448 = vmatprep.subr.mxu0 0.0
    %449 = vmatpush1.msra.mxu0 0.0
    %450 = vmatprep.subr.mxu0 0.0
    %451 = vmatpush1.msra.mxu0 0.0
    %452 = vmatprep.subr.mxu0 0.0
    %453 = vmatpush1.msra.mxu0 0.0
    %454 = vmatprep.subr.mxu0 0.0
    %455 = vmatpush1.msra.mxu0 0.0
    %456 = vmatprep.subr.mxu0 0.0
    %457 = vmatpush1.msra.mxu0 0.0
    %458 = vmatprep.subr.mxu0 0.0
    %459 = vmatpush1.msra.mxu0 0.0
    %460 = vmatprep.mubr.f32.mxu0 0.0
    %461 = vmatmul.mubr.f32.gmra.mrb[0].mxu0 %v394
    %v462 = vpop.f32.mrb[0].mxu0
    %v463 = vadd.f32 0.0, %v462
    %v464 = vpop.f32.mrb[0].mxu0
    %465 = vdwg.mxu0
    %466 = vrot.lane.b32.xlu0 %v199, 64
    %v467 = vpop.permute.xlu0 %466
    %v470 = vsel %vm214, %v389, 0
    %472 = vmatprep.subr.mxu0 0.0
    %473 = vmatpush1.msra.mxu0 %v467
    %474 = vmatprep.subr.mxu0 0.0
    %475 = vmatpush1.msra.mxu0 0.0
    %476 = vmatprep.subr.mxu0 0.0
    %477 = vmatpush1.msra.mxu0 0.0
    %478 = vmatprep.subr.mxu0 0.0
    %479 = vmatpush1.msra.mxu0 0.0
    %480 = vmatprep.subr.mxu0 0.0
    %481 = vmatpush1.msra.mxu0 0.0
    %482 = vmatprep.subr.mxu0 0.0
    %483 = vmatpush1.msra.mxu0 0.0
    %484 = vmatprep.subr.mxu0 0.0
    %485 = vmatpush1.msra.mxu0 0.0
    %486 = vmatprep.subr.mxu0 0.0
    %487 = vmatpush1.msra.mxu0 0.0
    %488 = vmatprep.subr.mxu0 0.0
    %489 = vmatpush1.msra.mxu0 0.0
    %490 = vmatprep.subr.mxu0 0.0
    %491 = vmatpush1.msra.mxu0 0.0
    %492 = vmatprep.subr.mxu0 0.0
    %493 = vmatpush1.msra.mxu0 0.0
    %494 = vmatprep.subr.mxu0 0.0
    %495 = vmatpush1.msra.mxu0 0.0
    %496 = vmatprep.subr.mxu0 0.0
    %497 = vmatpush1.msra.mxu0 0.0
    %498 = vmatprep.subr.mxu0 0.0
    %499 = vmatpush1.msra.mxu0 0.0
    %500 = vmatprep.subr.mxu0 0.0
    %501 = vmatpush1.msra.mxu0 0.0
    %502 = vmatprep.subr.mxu0 0.0
    %503 = vmatpush1.msra.mxu0 0.0
    %504 = vmatprep.subr.mxu0 0.0
    %505 = vmatpush1.msra.mxu0 0.0
    %506 = vmatprep.subr.mxu0 0.0
    %507 = vmatpush1.msra.mxu0 0.0
    %508 = vmatprep.subr.mxu0 0.0
    %509 = vmatpush1.msra.mxu0 0.0
    %510 = vmatprep.subr.mxu0 0.0
    %511 = vmatpush1.msra.mxu0 0.0
    %512 = vmatprep.subr.mxu0 0.0
    %513 = vmatpush1.msra.mxu0 0.0
    %514 = vmatprep.subr.mxu0 0.0
    %515 = vmatpush1.msra.mxu0 0.0
    %516 = vmatprep.subr.mxu0 0.0
    %517 = vmatpush1.msra.mxu0 0.0
    %518 = vmatprep.subr.mxu0 0.0
    %519 = vmatpush1.msra.mxu0 0.0
    %520 = vmatprep.subr.mxu0 0.0
    %521 = vmatpush1.msra.mxu0 0.0
    %522 = vmatprep.subr.mxu0 0.0
    %523 = vmatpush1.msra.mxu0 0.0
    %524 = vmatprep.subr.mxu0 0.0
    %525 = vmatpush1.msra.mxu0 0.0
    %526 = vmatprep.subr.mxu0 0.0
    %527 = vmatpush1.msra.mxu0 0.0
    %528 = vmatprep.subr.mxu0 0.0
    %529 = vmatpush1.msra.mxu0 0.0
    %530 = vmatprep.subr.mxu0 0.0
    %531 = vmatpush1.msra.mxu0 0.0
    %532 = vmatprep.subr.mxu0 0.0
    %533 = vmatpush1.msra.mxu0 0.0
    %534 = vmatprep.subr.mxu0 0.0
    %535 = vmatpush1.msra.mxu0 0.0
    %536 = vmatprep.mubr.f32.mxu0 0.0
    %537 = vmatmul.mubr.f32.gmra.mrb[0].mxu0 %v470
    %v538 = vpop.f32.mrb[0].mxu0
    %v539 = vadd.f32 0.0, %v538
    %v540 = vpop.f32.mrb[0].mxu0
    %541 = vdwg.mxu0
    %v542 = vld [vmem:[%s5] sm:$0xff]
    %v544 = vsel %vm214, %v463, 0
    %v547 = vsel %vm214, %v539, 0
    %549 = vmatprep.subr.mxu0 0.0
    %550 = vmatpush1.msra.mxu0 %v542
    %551 = vmatprep.subr.mxu0 0.0
    %552 = vmatpush1.msra.mxu0 0.0
    %553 = vmatprep.subr.mxu0 0.0
    %554 = vmatpush1.msra.mxu0 0.0
    %555 = vmatprep.subr.mxu0 0.0
    %556 = vmatpush1.msra.mxu0 0.0
    %557 = vmatprep.subr.mxu0 0.0
    %558 = vmatpush1.msra.mxu0 0.0
    %559 = vmatprep.subr.mxu0 0.0
    %560 = vmatpush1.msra.mxu0 0.0
    %561 = vmatprep.subr.mxu0 0.0
    %562 = vmatpush1.msra.mxu0 0.0
    %563 = vmatprep.subr.mxu0 0.0
    %564 = vmatpush1.msra.mxu0 0.0
    %565 = vmatprep.subr.mxu0 0.0
    %566 = vmatpush1.msra.mxu0 0.0
    %567 = vmatprep.subr.mxu0 0.0
    %568 = vmatpush1.msra.mxu0 0.0
    %569 = vmatprep.subr.mxu0 0.0
    %570 = vmatpush1.msra.mxu0 0.0
    %571 = vmatprep.subr.mxu0 0.0
    %572 = vmatpush1.msra.mxu0 0.0
    %573 = vmatprep.subr.mxu0 0.0
    %574 = vmatpush1.msra.mxu0 0.0
    %575 = vmatprep.subr.mxu0 0.0
    %576 = vmatpush1.msra.mxu0 0.0
    %577 = vmatprep.subr.mxu0 0.0
    %578 = vmatpush1.msra.mxu0 0.0
    %579 = vmatprep.subr.mxu0 0.0
    %580 = vmatpush1.msra.mxu0 0.0
    %581 = vmatprep.subr.mxu0 0.0
    %582 = vmatpush1.msra.mxu0 0.0
    %583 = vmatprep.subr.mxu0 0.0
    %584 = vmatpush1.msra.mxu0 0.0
    %585 = vmatprep.subr.mxu0 0.0
    %586 = vmatpush1.msra.mxu0 0.0
    %587 = vmatprep.subr.mxu0 0.0
    %588 = vmatpush1.msra.mxu0 0.0
    %589 = vmatprep.subr.mxu0 0.0
    %590 = vmatpush1.msra.mxu0 0.0
    %591 = vmatprep.subr.mxu0 0.0
    %592 = vmatpush1.msra.mxu0 0.0
    %593 = vmatprep.subr.mxu0 0.0
    %594 = vmatpush1.msra.mxu0 0.0
    %595 = vmatprep.subr.mxu0 0.0
    %596 = vmatpush1.msra.mxu0 0.0
    %597 = vmatprep.subr.mxu0 0.0
    %598 = vmatpush1.msra.mxu0 0.0
    %599 = vmatprep.subr.mxu0 0.0
    %600 = vmatpush1.msra.mxu0 0.0
    %601 = vmatprep.subr.mxu0 0.0
    %602 = vmatpush1.msra.mxu0 0.0
    %603 = vmatprep.subr.mxu0 0.0
    %604 = vmatpush1.msra.mxu0 0.0
    %605 = vmatprep.subr.mxu0 0.0
    %606 = vmatpush1.msra.mxu0 0.0
    %607 = vmatprep.subr.mxu0 0.0
    %608 = vmatpush1.msra.mxu0 0.0
    %609 = vmatprep.subr.mxu0 0.0
    %610 = vmatpush1.msra.mxu0 0.0
    %611 = vmatprep.subr.mxu0 0.0
    %612 = vmatpush1.msra.mxu0 0.0
    %613 = vmatprep.mubr.f32.mxu0 0.0
    %614 = vmatmul.mubr.f32.gmra.mrb[0].mxu0 %v544
    %v615 = vpop.f32.mrb[0].mxu0
    %v616 = vadd.f32 0.0, %v615
    %v617 = vpop.f32.mrb[0].mxu0
    %618 = vmatprep.mubr.f32.mxu0 0.0
    %619 = vmatmul.mubr.f32.gmra.mrb[0].mxu0 %v547
    %v620 = vpop.f32.mrb[0].mxu0
    %v621 = vadd.f32 0.0, %v620
    %v622 = vpop.f32.mrb[0].mxu0
    %623 = vdwg.mxu0
    %v624 = vadd.f32 %v209, %v616
    %v625 = vadd.f32 %v210, %v621
    %626 = vrot.lane.b32.xlu0 %v194, 120
    %v627 = vpop.permute.xlu0 %626
    %628 = vrot.lane.b32.xlu0 %v194, 88
    %v629 = vpop.permute.xlu0 %628
    %v630 = vsel %vm214, %v627, 0
    %v632 = vsel %vm214, %v629, 0
    %634 = vmatprep.subr.mxu0 0.0
    %635 = vmatpush1.xpose.msra.mxu0 %v632
    %636 = vmatprep.subr.mxu0 0.0
    %637 = vmatpush1.xpose.msra.mxu0 0.0
    %638 = vmatprep.subr.mxu0 0.0
    %639 = vmatpush1.xpose.msra.mxu0 0.0
    %640 = vmatprep.subr.mxu0 0.0
    %641 = vmatpush1.xpose.msra.mxu0 0.0
    %642 = vmatprep.subr.mxu0 0.0
    %643 = vmatpush1.xpose.msra.mxu0 0.0
    %644 = vmatprep.subr.mxu0 0.0
    %645 = vmatpush1.xpose.msra.mxu0 0.0
    %646 = vmatprep.subr.mxu0 0.0
    %647 = vmatpush1.xpose.msra.mxu0 0.0
    %648 = vmatprep.subr.mxu0 0.0
    %649 = vmatpush1.xpose.msra.mxu0 0.0
    %650 = vmatprep.subr.mxu0 0.0
    %651 = vmatpush1.xpose.msra.mxu0 0.0
    %652 = vmatprep.subr.mxu0 0.0
    %653 = vmatpush1.xpose.msra.mxu0 0.0
    %654 = vmatprep.subr.mxu0 0.0
    %655 = vmatpush1.xpose.msra.mxu0 0.0
    %656 = vmatprep.subr.mxu0 0.0
    %657 = vmatpush1.xpose.msra.mxu0 0.0
    %658 = vmatprep.subr.mxu0 0.0
    %659 = vmatpush1.xpose.msra.mxu0 0.0
    %660 = vmatprep.subr.mxu0 0.0
    %661 = vmatpush1.xpose.msra.mxu0 0.0
    %662 = vmatprep.subr.mxu0 0.0
    %663 = vmatpush1.xpose.msra.mxu0 0.0
    %664 = vmatprep.subr.mxu0 0.0
    %665 = vmatpush1.xpose.msra.mxu0 0.0
    %666 = vmatprep.subr.mxu0 0.0
    %667 = vmatpush1.xpose.msra.mxu0 0.0
    %668 = vmatprep.subr.mxu0 0.0
    %669 = vmatpush1.xpose.msra.mxu0 0.0
    %670 = vmatprep.subr.mxu0 0.0
    %671 = vmatpush1.xpose.msra.mxu0 0.0
    %672 = vmatprep.subr.mxu0 0.0
    %673 = vmatpush1.xpose.msra.mxu0 0.0
    %674 = vmatprep.subr.mxu0 0.0
    %675 = vmatpush1.xpose.msra.mxu0 0.0
    %676 = vmatprep.subr.mxu0 0.0
    %677 = vmatpush1.xpose.msra.mxu0 0.0
    %678 = vmatprep.subr.mxu0 0.0
    %679 = vmatpush1.xpose.msra.mxu0 0.0
    %680 = vmatprep.subr.mxu0 0.0
    %681 = vmatpush1.xpose.msra.mxu0 0.0
    %682 = vmatprep.subr.mxu0 0.0
    %683 = vmatpush1.xpose.msra.mxu0 0.0
    %684 = vmatprep.subr.mxu0 0.0
    %685 = vmatpush1.xpose.msra.mxu0 0.0
    %686 = vmatprep.subr.mxu0 0.0
    %687 = vmatpush1.xpose.msra.mxu0 0.0
    %688 = vmatprep.subr.mxu0 0.0
    %689 = vmatpush1.xpose.msra.mxu0 0.0
    %690 = vmatprep.subr.mxu0 0.0
    %691 = vmatpush1.xpose.msra.mxu0 0.0
    %692 = vmatprep.subr.mxu0 0.0
    %693 = vmatpush1.xpose.msra.mxu0 0.0
    %694 = vmatprep.subr.mxu0 0.0
    %695 = vmatpush1.xpose.msra.mxu0 0.0
    %696 = vmatprep.subr.mxu0 0.0
    %697 = vmatpush1.xpose.msra.mxu0 0.0
    %698 = vmatprep.mubr.f32.mxu0 0.0
    %699 = vmatmul.mubr.f32.gmra.mrb[0].mxu0 %v630
    %v700 = vpop.f32.mrb[0].mxu0
    %v701 = vadd.f32 0.0, %v700
    %v702 = vpop.f32.mrb[0].mxu0
    %703 = vdwg.mxu0
    %704 = vrot.lane.b32.xlu0 %v199, 120
    %v705 = vpop.permute.xlu0 %704
    %706 = vrot.lane.b32.xlu0 %v199, 88
    %v707 = vpop.permute.xlu0 %706
    %v708 = vsel %vm214, %v705, 0
    %v710 = vsel %vm214, %v707, 0
    %712 = vmatprep.subr.mxu0 0.0
    %713 = vmatpush1.xpose.msra.mxu0 %v710
    %714 = vmatprep.subr.mxu0 0.0
    %715 = vmatpush1.xpose.msra.mxu0 0.0
    %716 = vmatprep.subr.mxu0 0.0
    %717 = vmatpush1.xpose.msra.mxu0 0.0
    %718 = vmatprep.subr.mxu0 0.0
    %719 = vmatpush1.xpose.msra.mxu0 0.0
    %720 = vmatprep.subr.mxu0 0.0
    %721 = vmatpush1.xpose.msra.mxu0 0.0
    %722 = vmatprep.subr.mxu0 0.0
    %723 = vmatpush1.xpose.msra.mxu0 0.0
    %724 = vmatprep.subr.mxu0 0.0
    %725 = vmatpush1.xpose.msra.mxu0 0.0
    %726 = vmatprep.subr.mxu0 0.0
    %727 = vmatpush1.xpose.msra.mxu0 0.0
    %728 = vmatprep.subr.mxu0 0.0
    %729 = vmatpush1.xpose.msra.mxu0 0.0
    %730 = vmatprep.subr.mxu0 0.0
    %731 = vmatpush1.xpose.msra.mxu0 0.0
    %732 = vmatprep.subr.mxu0 0.0
    %733 = vmatpush1.xpose.msra.mxu0 0.0
    %734 = vmatprep.subr.mxu0 0.0
    %735 = vmatpush1.xpose.msra.mxu0 0.0
    %736 = vmatprep.subr.mxu0 0.0
    %737 = vmatpush1.xpose.msra.mxu0 0.0
    %738 = vmatprep.subr.mxu0 0.0
    %739 = vmatpush1.xpose.msra.mxu0 0.0
    %740 = vmatprep.subr.mxu0 0.0
    %741 = vmatpush1.xpose.msra.mxu0 0.0
    %742 = vmatprep.subr.mxu0 0.0
    %743 = vmatpush1.xpose.msra.mxu0 0.0
    %744 = vmatprep.subr.mxu0 0.0
    %745 = vmatpush1.xpose.msra.mxu0 0.0
    %746 = vmatprep.subr.mxu0 0.0
    %747 = vmatpush1.xpose.msra.mxu0 0.0
    %748 = vmatprep.subr.mxu0 0.0
    %749 = vmatpush1.xpose.msra.mxu0 0.0
    %750 = vmatprep.subr.mxu0 0.0
    %751 = vmatpush1.xpose.msra.mxu0 0.0
    %752 = vmatprep.subr.mxu0 0.0
    %753 = vmatpush1.xpose.msra.mxu0 0.0
    %754 = vmatprep.subr.mxu0 0.0
    %755 = vmatpush1.xpose.msra.mxu0 0.0
    %756 = vmatprep.subr.mxu0 0.0
    %757 = vmatpush1.xpose.msra.mxu0 0.0
    %758 = vmatprep.subr.mxu0 0.0
    %759 = vmatpush1.xpose.msra.mxu0 0.0
    %760 = vmatprep.subr.mxu0 0.0
    %761 = vmatpush1.xpose.msra.mxu0 0.0
    %762 = vmatprep.subr.mxu0 0.0
    %763 = vmatpush1.xpose.msra.mxu0 0.0
    %764 = vmatprep.subr.mxu0 0.0
    %765 = vmatpush1.xpose.msra.mxu0 0.0
    %766 = vmatprep.subr.mxu0 0.0
    %767 = vmatpush1.xpose.msra.mxu0 0.0
    %768 = vmatprep.subr.mxu0 0.0
    %769 = vmatpush1.xpose.msra.mxu0 0.0
    %770 = vmatprep.subr.mxu0 0.0
    %771 = vmatpush1.xpose.msra.mxu0 0.0
    %772 = vmatprep.subr.mxu0 0.0
    %773 = vmatpush1.xpose.msra.mxu0 0.0
    %774 = vmatprep.subr.mxu0 0.0
    %775 = vmatpush1.xpose.msra.mxu0 0.0
    %776 = vmatprep.mubr.f32.mxu0 0.0
    %777 = vmatmul.mubr.f32.gmra.mrb[0].mxu0 %v708
    %v778 = vpop.f32.mrb[0].mxu0
    %v779 = vadd.f32 0.0, %v778
    %v780 = vpop.f32.mrb[0].mxu0
    %781 = vdwg.mxu0
    %v782 = vmul.f32 %v701, 0.35355338
    %v783 = vmul.f32 %v779, 0.35355338
    %v784 = vsel %vm214, %v782, -inf
    %785 = vmax.xlane.f32.xlu0 %v784
    %v786 = vpop.xlane.xlu0 %785
    %v787 = vsel %vm214, %v783, -inf
    %788 = vmax.xlane.f32.xlu0 %v787
    %v789 = vpop.xlane.xlu0 %788
    %v790 = vsub.f32 %v782, %v786
    %v791 = vsub.f32 %v783, %v789
    %v792 = vmul.f32 %v790, 1.442695
    %v793 = vpow.pop %v792
    %v794 = vmul.f32 %v791, 1.442695
    %v795 = vpow.pop %v794
    %v796 = vsel %vm214, %v793, 0.0
    %797 = vadd.xlane.f32.xlu0 %v796
    %v798 = vpop.xlane.xlu0 %797
    %v799 = vsel %vm214, %v795, 0.0
    %800 = vadd.xlane.f32.xlu0 %v799
    %v801 = vpop.xlane.xlu0 %800
    %v802 = vrcp.pop %v798
    %v803 = vrcp.pop %v801
    %v804 = vmul.f32 %v793, %v802
    %v805 = vmul.f32 %v795, %v803
    %806 = vrot.lane.b32.xlu0 %v194, 56
    %v807 = vpop.permute.xlu0 %806
    %v810 = vsel %vm214, %v804, 0
    %812 = vmatprep.subr.mxu0 0.0
    %813 = vmatpush1.msra.mxu0 %v807
    %814 = vmatprep.subr.mxu0 0.0
    %815 = vmatpush1.msra.mxu0 0.0
    %816 = vmatprep.subr.mxu0 0.0
    %817 = vmatpush1.msra.mxu0 0.0
    %818 = vmatprep.subr.mxu0 0.0
    %819 = vmatpush1.msra.mxu0 0.0
    %820 = vmatprep.subr.mxu0 0.0
    %821 = vmatpush1.msra.mxu0 0.0
    %822 = vmatprep.subr.mxu0 0.0
    %823 = vmatpush1.msra.mxu0 0.0
    %824 = vmatprep.subr.mxu0 0.0
    %825 = vmatpush1.msra.mxu0 0.0
    %826 = vmatprep.subr.mxu0 0.0
    %827 = vmatpush1.msra.mxu0 0.0
    %828 = vmatprep.subr.mxu0 0.0
    %829 = vmatpush1.msra.mxu0 0.0
    %830 = vmatprep.subr.mxu0 0.0
    %831 = vmatpush1.msra.mxu0 0.0
    %832 = vmatprep.subr.mxu0 0.0
    %833 = vmatpush1.msra.mxu0 0.0
    %834 = vmatprep.subr.mxu0 0.0
    %835 = vmatpush1.msra.mxu0 0.0
    %836 = vmatprep.subr.mxu0 0.0
    %837 = vmatpush1.msra.mxu0 0.0
    %838 = vmatprep.subr.mxu0 0.0
    %839 = vmatpush1.msra.mxu0 0.0
    %840 = vmatprep.subr.mxu0 0.0
    %841 = vmatpush1.msra.mxu0 0.0
    %842 = vmatprep.subr.mxu0 0.0
    %843 = vmatpush1.msra.mxu0 0.0
    %844 = vmatprep.subr.mxu0 0.0
    %845 = vmatpush1.msra.mxu0 0.0
    %846 = vmatprep.subr.mxu0 0.0
    %847 = vmatpush1.msra.mxu0 0.0
    %848 = vmatprep.subr.mxu0 0.0
    %849 = vmatpush1.msra.mxu0 0.0
    %850 = vmatprep.subr.mxu0 0.0
    %851 = vmatpush1.msra.mxu0 0.0
    %852 = vmatprep.subr.mxu0 0.0
    %853 = vmatpush1.msra.mxu0 0.0
    %854 = vmatprep.subr.mxu0 0.0
    %855 = vmatpush1.msra.mxu0 0.0
    %856 = vmatprep.subr.mxu0 0.0
    %857 = vmatpush1.msra.mxu0 0.0
    %858 = vmatprep.subr.mxu0 0.0
    %859 = vmatpush1.msra.mxu0 0.0
    %860 = vmatprep.subr.mxu0 0.0
    %861 = vmatpush1.msra.mxu0 0.0
    %862 = vmatprep.subr.mxu0 0.0
    %863 = vmatpush1.msra.mxu0 0.0
    %864 = vmatprep.subr.mxu0 0.0
    %865 = vmatpush1.msra.mxu0 0.0
    %866 = vmatprep.subr.mxu0 0.0
    %867 = vmatpush1.msra.mxu0 0.0
    %868 = vmatprep.subr.mxu0 0.0
    %869 = vmatpush1.msra.mxu0 0.0
    %870 = vmatprep.subr.mxu0 0.0
    %871 = vmatpush1.msra.mxu0 0.0
    %872 = vmatprep.subr.mxu0 0.0
    %873 = vmatpush1.msra.mxu0 0.0
    %874 = vmatprep.subr.mxu0 0.0
    %875 = vmatpush1.msra.mxu0 0.0
    %876 = vmatprep.mubr.f32.mxu0 0.0
    %877 = vmatmul.mubr.f32.gmra.mrb[0].mxu0 %v810
    %v878 = vpop.f32.mrb[0].mxu0
    %v879 = vadd.f32 0.0, %v878
    %v880 = vpop.f32.mrb[0].mxu0
    %881 = vdwg.mxu0
    %882 = vrot.lane.b32.xlu0 %v199, 56
    %v883 = vpop.permute.xlu0 %882
    %v886 = vsel %vm214, %v805, 0
    %888 = vmatprep.subr.mxu0 0.0
    %889 = vmatpush1.msra.mxu0 %v883
    %890 = vmatprep.subr.mxu0 0.0
    %891 = vmatpush1.msra.mxu0 0.0
    %892 = vmatprep.subr.mxu0 0.0
    %893 = vmatpush1.msra.mxu0 0.0
    %894 = vmatprep.subr.mxu0 0.0
    %895 = vmatpush1.msra.mxu0 0.0
    %896 = vmatprep.subr.mxu0 0.0
    %897 = vmatpush1.msra.mxu0 0.0
    %898 = vmatprep.subr.mxu0 0.0
    %899 = vmatpush1.msra.mxu0 0.0
    %900 = vmatprep.subr.mxu0 0.0
    %901 = vmatpush1.msra.mxu0 0.0
    %902 = vmatprep.subr.mxu0 0.0
    %903 = vmatpush1.msra.mxu0 0.0
    %904 = vmatprep.subr.mxu0 0.0
    %905 = vmatpush1.msra.mxu0 0.0
    %906 = vmatprep.subr.mxu0 0.0
    %907 = vmatpush1.msra.mxu0 0.0
    %908 = vmatprep.subr.mxu0 0.0
    %909 = vmatpush1.msra.mxu0 0.0
    %910 = vmatprep.subr.mxu0 0.0
    %911 = vmatpush1.msra.mxu0 0.0
    %912 = vmatprep.subr.mxu0 0.0
    %913 = vmatpush1.msra.mxu0 0.0
    %914 = vmatprep.subr.mxu0 0.0
    %915 = vmatpush1.msra.mxu0 0.0
    %916 = vmatprep.subr.mxu0 0.0
    %917 = vmatpush1.msra.mxu0 0.0
    %918 = vmatprep.subr.mxu0 0.0
    %919 = vmatpush1.msra.mxu0 0.0
    %920 = vmatprep.subr.mxu0 0.0
    %921 = vmatpush1.msra.mxu0 0.0
    %922 = vmatprep.subr.mxu0 0.0
    %923 = vmatpush1.msra.mxu0 0.0
    %924 = vmatprep.subr.mxu0 0.0
    %925 = vmatpush1.msra.mxu0 0.0
    %926 = vmatprep.subr.mxu0 0.0
    %927 = vmatpush1.msra.mxu0 0.0
    %928 = vmatprep.subr.mxu0 0.0
    %929 = vmatpush1.msra.mxu0 0.0
    %930 = vmatprep.subr.mxu0 0.0
    %931 = vmatpush1.msra.mxu0 0.0
    %932 = vmatprep.subr.mxu0 0.0
    %933 = vmatpush1.msra.mxu0 0.0
    %934 = vmatprep.subr.mxu0 0.0
    %935 = vmatpush1.msra.mxu0 0.0
    %936 = vmatprep.subr.mxu0 0.0
    %937 = vmatpush1.msra.mxu0 0.0
    %938 = vmatprep.subr.mxu0 0.0
    %939 = vmatpush1.msra.mxu0 0.0
    %940 = vmatprep.subr.mxu0 0.0
    %941 = vmatpush1.msra.mxu0 0.0
    %942 = vmatprep.subr.mxu0 0.0
    %943 = vmatpush1.msra.mxu0 0.0
    %944 = vmatprep.subr.mxu0 0.0
    %945 = vmatpush1.msra.mxu0 0.0
    %946 = vmatprep.subr.mxu0 0.0
    %947 = vmatpush1.msra.mxu0 0.0
    %948 = vmatprep.subr.mxu0 0.0
    %949 = vmatpush1.msra.mxu0 0.0
    %950 = vmatprep.subr.mxu0 0.0
    %951 = vmatpush1.msra.mxu0 0.0
    %952 = vmatprep.mubr.f32.mxu0 0.0
    %953 = vmatmul.mubr.f32.gmra.mrb[0].mxu0 %v886
    %v954 = vpop.f32.mrb[0].mxu0
    %v955 = vadd.f32 0.0, %v954
    %v956 = vpop.f32.mrb[0].mxu0
    %957 = vdwg.mxu0
    %v958 = vld [vmem:[%s5 + $0x8] sm:$0xff]
    %v960 = vsel %vm214, %v879, 0
    %v963 = vsel %vm214, %v955, 0
    %965 = vmatprep.subr.mxu0 0.0
    %966 = vmatpush1.msra.mxu0 %v958
    %967 = vmatprep.subr.mxu0 0.0
    %968 = vmatpush1.msra.mxu0 0.0
    %969 = vmatprep.subr.mxu0 0.0
    %970 = vmatpush1.msra.mxu0 0.0
    %971 = vmatprep.subr.mxu0 0.0
    %972 = vmatpush1.msra.mxu0 0.0
    %973 = vmatprep.subr.mxu0 0.0
    %974 = vmatpush1.msra.mxu0 0.0
    %975 = vmatprep.subr.mxu0 0.0
    %976 = vmatpush1.msra.mxu0 0.0
    %977 = vmatprep.subr.mxu0 0.0
    %978 = vmatpush1.msra.mxu0 0.0
    %979 = vmatprep.subr.mxu0 0.0
    %980 = vmatpush1.msra.mxu0 0.0
    %981 = vmatprep.subr.mxu0 0.0
    %982 = vmatpush1.msra.mxu0 0.0
    %983 = vmatprep.subr.mxu0 0.0
    %984 = vmatpush1.msra.mxu0 0.0
    %985 = vmatprep.subr.mxu0 0.0
    %986 = vmatpush1.msra.mxu0 0.0
    %987 = vmatprep.subr.mxu0 0.0
    %988 = vmatpush1.msra.mxu0 0.0
    %989 = vmatprep.subr.mxu0 0.0
    %990 = vmatpush1.msra.mxu0 0.0
    %991 = vmatprep.subr.mxu0 0.0
    %992 = vmatpush1.msra.mxu0 0.0
    %993 = vmatprep.subr.mxu0 0.0
    %994 = vmatpush1.msra.mxu0 0.0
    %995 = vmatprep.subr.mxu0 0.0
    %996 = vmatpush1.msra.mxu0 0.0
    %997 = vmatprep.subr.mxu0 0.0
    %998 = vmatpush1.msra.mxu0 0.0
    %999 = vmatprep.subr.mxu0 0.0
    %1000 = vmatpush1.msra.mxu0 0.0
    %1001 = vmatprep.subr.mxu0 0.0
    %1002 = vmatpush1.msra.mxu0 0.0
    %1003 = vmatprep.subr.mxu0 0.0
    %1004 = vmatpush1.msra.mxu0 0.0
    %1005 = vmatprep.subr.mxu0 0.0
    %1006 = vmatpush1.msra.mxu0 0.0
    %1007 = vmatprep.subr.mxu0 0.0
    %1008 = vmatpush1.msra.mxu0 0.0
    %1009 = vmatprep.subr.mxu0 0.0
    %1010 = vmatpush1.msra.mxu0 0.0
    %1011 = vmatprep.subr.mxu0 0.0
    %1012 = vmatpush1.msra.mxu0 0.0
    %1013 = vmatprep.subr.mxu0 0.0
    %1014 = vmatpush1.msra.mxu0 0.0
    %1015 = vmatprep.subr.mxu0 0.0
    %1016 = vmatpush1.msra.mxu0 0.0
    %1017 = vmatprep.subr.mxu0 0.0
    %1018 = vmatpush1.msra.mxu0 0.0
    %1019 = vmatprep.subr.mxu0 0.0
    %1020 = vmatpush1.msra.mxu0 0.0
    %1021 = vmatprep.subr.mxu0 0.0
    %1022 = vmatpush1.msra.mxu0 0.0
    %1023 = vmatprep.subr.mxu0 0.0
    %1024 = vmatpush1.msra.mxu0 0.0
    %1025 = vmatprep.subr.mxu0 0.0
    %1026 = vmatpush1.msra.mxu0 0.0
    %1027 = vmatprep.subr.mxu0 0.0
    %1028 = vmatpush1.msra.mxu0 0.0
    %1029 = vmatprep.mubr.f32.mxu0 0.0
    %1030 = vmatmul.mubr.f32.gmra.mrb[0].mxu0 %v960
    %v1031 = vpop.f32.mrb[0].mxu0
    %v1032 = vadd.f32 0.0, %v1031
    %v1033 = vpop.f32.mrb[0].mxu0
    %1034 = vmatprep.mubr.f32.mxu0 0.0
    %1035 = vmatmul.mubr.f32.gmra.mrb[0].mxu0 %v963
    %v1036 = vpop.f32.mrb[0].mxu0
    %v1037 = vadd.f32 0.0, %v1036
    %v1038 = vpop.f32.mrb[0].mxu0
    %1039 = vdwg.mxu0
    %v1040 = vadd.f32 %v624, %v1032
    %v1041 = vadd.f32 %v625, %v1037
    %1042 = vrot.lane.b32.xlu0 %v194, 112
    %v1043 = vpop.permute.xlu0 %1042
    %1044 = vrot.lane.b32.xlu0 %v194, 80
    %v1045 = vpop.permute.xlu0 %1044
    %v1046 = vsel %vm214, %v1043, 0
    %v1048 = vsel %vm214, %v1045, 0
    %1050 = vmatprep.subr.mxu0 0.0
    %1051 = vmatpush1.xpose.msra.mxu0 %v1048
    %1052 = vmatprep.subr.mxu0 0.0
    %1053 = vmatpush1.xpose.msra.mxu0 0.0
    %1054 = vmatprep.subr.mxu0 0.0
    %1055 = vmatpush1.xpose.msra.mxu0 0.0
    %1056 = vmatprep.subr.mxu0 0.0
    %1057 = vmatpush1.xpose.msra.mxu0 0.0
    %1058 = vmatprep.subr.mxu0 0.0
    %1059 = vmatpush1.xpose.msra.mxu0 0.0
    %1060 = vmatprep.subr.mxu0 0.0
    %1061 = vmatpush1.xpose.msra.mxu0 0.0
    %1062 = vmatprep.subr.mxu0 0.0
    %1063 = vmatpush1.xpose.msra.mxu0 0.0
    %1064 = vmatprep.subr.mxu0 0.0
    %1065 = vmatpush1.xpose.msra.mxu0 0.0
    %1066 = vmatprep.subr.mxu0 0.0
    %1067 = vmatpush1.xpose.msra.mxu0 0.0
    %1068 = vmatprep.subr.mxu0 0.0
    %1069 = vmatpush1.xpose.msra.mxu0 0.0
    %1070 = vmatprep.subr.mxu0 0.0
    %1071 = vmatpush1.xpose.msra.mxu0 0.0
    %1072 = vmatprep.subr.mxu0 0.0
    %1073 = vmatpush1.xpose.msra.mxu0 0.0
    %1074 = vmatprep.subr.mxu0 0.0
    %1075 = vmatpush1.xpose.msra.mxu0 0.0
    %1076 = vmatprep.subr.mxu0 0.0
    %1077 = vmatpush1.xpose.msra.mxu0 0.0
    %1078 = vmatprep.subr.mxu0 0.0
    %1079 = vmatpush1.xpose.msra.mxu0 0.0
    %1080 = vmatprep.subr.mxu0 0.0
    %1081 = vmatpush1.xpose.msra.mxu0 0.0
    %1082 = vmatprep.subr.mxu0 0.0
    %1083 = vmatpush1.xpose.msra.mxu0 0.0
    %1084 = vmatprep.subr.mxu0 0.0
    %1085 = vmatpush1.xpose.msra.mxu0 0.0
    %1086 = vmatprep.subr.mxu0 0.0
    %1087 = vmatpush1.xpose.msra.mxu0 0.0
    %1088 = vmatprep.subr.mxu0 0.0
    %1089 = vmatpush1.xpose.msra.mxu0 0.0
    %1090 = vmatprep.subr.mxu0 0.0
    %1091 = vmatpush1.xpose.msra.mxu0 0.0
    %1092 = vmatprep.subr.mxu0 0.0
    %1093 = vmatpush1.xpose.msra.mxu0 0.0
    %1094 = vmatprep.subr.mxu0 0.0
    %1095 = vmatpush1.xpose.msra.mxu0 0.0
    %1096 = vmatprep.subr.mxu0 0.0
    %1097 = vmatpush1.xpose.msra.mxu0 0.0
    %1098 = vmatprep.subr.mxu0 0.0
    %1099 = vmatpush1.xpose.msra.mxu0 0.0
    %1100 = vmatprep.subr.mxu0 0.0
    %1101 = vmatpush1.xpose.msra.mxu0 0.0
    %1102 = vmatprep.subr.mxu0 0.0
    %1103 = vmatpush1.xpose.msra.mxu0 0.0
    %1104 = vmatprep.subr.mxu0 0.0
    %1105 = vmatpush1.xpose.msra.mxu0 0.0
    %1106 = vmatprep.subr.mxu0 0.0
    %1107 = vmatpush1.xpose.msra.mxu0 0.0
    %1108 = vmatprep.subr.mxu0 0.0
    %1109 = vmatpush1.xpose.msra.mxu0 0.0
    %1110 = vmatprep.subr.mxu0 0.0
    %1111 = vmatpush1.xpose.msra.mxu0 0.0
    %1112 = vmatprep.subr.mxu0 0.0
    %1113 = vmatpush1.xpose.msra.mxu0 0.0
    %1114 = vmatprep.mubr.f32.mxu0 0.0
    %1115 = vmatmul.mubr.f32.gmra.mrb[0].mxu0 %v1046
    %v1116 = vpop.f32.mrb[0].mxu0
    %v1117 = vadd.f32 0.0, %v1116
    %v1118 = vpop.f32.mrb[0].mxu0
    %1119 = vdwg.mxu0
    %1120 = vrot.lane.b32.xlu0 %v199, 112
    %v1121 = vpop.permute.xlu0 %1120
    %1122 = vrot.lane.b32.xlu0 %v199, 80
    %v1123 = vpop.permute.xlu0 %1122
    %v1124 = vsel %vm214, %v1121, 0
    %v1126 = vsel %vm214, %v1123, 0
    %1128 = vmatprep.subr.mxu0 0.0
    %1129 = vmatpush1.xpose.msra.mxu0 %v1126
    %1130 = vmatprep.subr.mxu0 0.0
    %1131 = vmatpush1.xpose.msra.mxu0 0.0
    %1132 = vmatprep.subr.mxu0 0.0
    %1133 = vmatpush1.xpose.msra.mxu0 0.0
    %1134 = vmatprep.subr.mxu0 0.0
    %1135 = vmatpush1.xpose.msra.mxu0 0.0
    %1136 = vmatprep.subr.mxu0 0.0
    %1137 = vmatpush1.xpose.msra.mxu0 0.0
    %1138 = vmatprep.subr.mxu0 0.0
    %1139 = vmatpush1.xpose.msra.mxu0 0.0
    %1140 = vmatprep.subr.mxu0 0.0
    %1141 = vmatpush1.xpose.msra.mxu0 0.0
    %1142 = vmatprep.subr.mxu0 0.0
    %1143 = vmatpush1.xpose.msra.mxu0 0.0
    %1144 = vmatprep.subr.mxu0 0.0
    %1145 = vmatpush1.xpose.msra.mxu0 0.0
    %1146 = vmatprep.subr.mxu0 0.0
    %1147 = vmatpush1.xpose.msra.mxu0 0.0
    %1148 = vmatprep.subr.mxu0 0.0
    %1149 = vmatpush1.xpose.msra.mxu0 0.0
    %1150 = vmatprep.subr.mxu0 0.0
    %1151 = vmatpush1.xpose.msra.mxu0 0.0
    %1152 = vmatprep.subr.mxu0 0.0
    %1153 = vmatpush1.xpose.msra.mxu0 0.0
    %1154 = vmatprep.subr.mxu0 0.0
    %1155 = vmatpush1.xpose.msra.mxu0 0.0
    %1156 = vmatprep.subr.mxu0 0.0
    %1157 = vmatpush1.xpose.msra.mxu0 0.0
    %1158 = vmatprep.subr.mxu0 0.0
    %1159 = vmatpush1.xpose.msra.mxu0 0.0
    %1160 = vmatprep.subr.mxu0 0.0
    %1161 = vmatpush1.xpose.msra.mxu0 0.0
    %1162 = vmatprep.subr.mxu0 0.0
    %1163 = vmatpush1.xpose.msra.mxu0 0.0
    %1164 = vmatprep.subr.mxu0 0.0
    %1165 = vmatpush1.xpose.msra.mxu0 0.0
    %1166 = vmatprep.subr.mxu0 0.0
    %1167 = vmatpush1.xpose.msra.mxu0 0.0
    %1168 = vmatprep.subr.mxu0 0.0
    %1169 = vmatpush1.xpose.msra.mxu0 0.0
    %1170 = vmatprep.subr.mxu0 0.0
    %1171 = vmatpush1.xpose.msra.mxu0 0.0
    %1172 = vmatprep.subr.mxu0 0.0
    %1173 = vmatpush1.xpose.msra.mxu0 0.0
    %1174 = vmatprep.subr.mxu0 0.0
    %1175 = vmatpush1.xpose.msra.mxu0 0.0
    %1176 = vmatprep.subr.mxu0 0.0
    %1177 = vmatpush1.xpose.msra.mxu0 0.0
    %1178 = vmatprep.subr.mxu0 0.0
    %1179 = vmatpush1.xpose.msra.mxu0 0.0
    %1180 = vmatprep.subr.mxu0 0.0
    %1181 = vmatpush1.xpose.msra.mxu0 0.0
    %1182 = vmatprep.subr.mxu0 0.0
    %1183 = vmatpush1.xpose.msra.mxu0 0.0
    %1184 = vmatprep.subr.mxu0 0.0
    %1185 = vmatpush1.xpose.msra.mxu0 0.0
    %1186 = vmatprep.subr.mxu0 0.0
    %1187 = vmatpush1.xpose.msra.mxu0 0.0
    %1188 = vmatprep.subr.mxu0 0.0
    %1189 = vmatpush1.xpose.msra.mxu0 0.0
    %1190 = vmatprep.subr.mxu0 0.0
    %1191 = vmatpush1.xpose.msra.mxu0 0.0
    %1192 = vmatprep.mubr.f32.mxu0 0.0
    %1193 = vmatmul.mubr.f32.gmra.mrb[0].mxu0 %v1124
    %v1194 = vpop.f32.mrb[0].mxu0
    %v1195 = vadd.f32 0.0, %v1194
    %v1196 = vpop.f32.mrb[0].mxu0
    %1197 = vdwg.mxu0
    %v1198 = vmul.f32 %v1117, 0.35355338
    %v1199 = vmul.f32 %v1195, 0.35355338
    %v1200 = vsel %vm214, %v1198, -inf
    %1201 = vmax.xlane.f32.xlu0 %v1200
    %v1202 = vpop.xlane.xlu0 %1201
    %v1203 = vsel %vm214, %v1199, -inf
    %1204 = vmax.xlane.f32.xlu0 %v1203
    %v1205 = vpop.xlane.xlu0 %1204
    %v1206 = vsub.f32 %v1198, %v1202
    %v1207 = vsub.f32 %v1199, %v1205
    %v1208 = vmul.f32 %v1206, 1.442695
    %v1209 = vpow.pop %v1208
    %v1210 = vmul.f32 %v1207, 1.442695
    %v1211 = vpow.pop %v1210
    %v1212 = vsel %vm214, %v1209, 0.0
    %1213 = vadd.xlane.f32.xlu0 %v1212
    %v1214 = vpop.xlane.xlu0 %1213
    %v1215 = vsel %vm214, %v1211, 0.0
    %1216 = vadd.xlane.f32.xlu0 %v1215
    %v1217 = vpop.xlane.xlu0 %1216
    %v1218 = vrcp.pop %v1214
    %v1219 = vrcp.pop %v1217
    %v1220 = vmul.f32 %v1209, %v1218
    %v1221 = vmul.f32 %v1211, %v1219
    %1222 = vrot.lane.b32.xlu0 %v194, 48
    %v1223 = vpop.permute.xlu0 %1222
    %v1226 = vsel %vm214, %v1220, 0
    %1228 = vmatprep.subr.mxu0 0.0
    %1229 = vmatpush1.msra.mxu0 %v1223
    %1230 = vmatprep.subr.mxu0 0.0
    %1231 = vmatpush1.msra.mxu0 0.0
    %1232 = vmatprep.subr.mxu0 0.0
    %1233 = vmatpush1.msra.mxu0 0.0
    %1234 = vmatprep.subr.mxu0 0.0
    %1235 = vmatpush1.msra.mxu0 0.0
    %1236 = vmatprep.subr.mxu0 0.0
    %1237 = vmatpush1.msra.mxu0 0.0
    %1238 = vmatprep.subr.mxu0 0.0
    %1239 = vmatpush1.msra.mxu0 0.0
    %1240 = vmatprep.subr.mxu0 0.0
    %1241 = vmatpush1.msra.mxu0 0.0
    %1242 = vmatprep.subr.mxu0 0.0
    %1243 = vmatpush1.msra.mxu0 0.0
    %1244 = vmatprep.subr.mxu0 0.0
    %1245 = vmatpush1.msra.mxu0 0.0
    %1246 = vmatprep.subr.mxu0 0.0
    %1247 = vmatpush1.msra.mxu0 0.0
    %1248 = vmatprep.subr.mxu0 0.0
    %1249 = vmatpush1.msra.mxu0 0.0
    %1250 = vmatprep.subr.mxu0 0.0
    %1251 = vmatpush1.msra.mxu0 0.0
    %1252 = vmatprep.subr.mxu0 0.0
    %1253 = vmatpush1.msra.mxu0 0.0
    %1254 = vmatprep.subr.mxu0 0.0
    %1255 = vmatpush1.msra.mxu0 0.0
    %1256 = vmatprep.subr.mxu0 0.0
    %1257 = vmatpush1.msra.mxu0 0.0
    %1258 = vmatprep.subr.mxu0 0.0
    %1259 = vmatpush1.msra.mxu0 0.0
    %1260 = vmatprep.subr.mxu0 0.0
    %1261 = vmatpush1.msra.mxu0 0.0
    %1262 = vmatprep.subr.mxu0 0.0
    %1263 = vmatpush1.msra.mxu0 0.0
    %1264 = vmatprep.subr.mxu0 0.0
    %1265 = vmatpush1.msra.mxu0 0.0
    %1266 = vmatprep.subr.mxu0 0.0
    %1267 = vmatpush1.msra.mxu0 0.0
    %1268 = vmatprep.subr.mxu0 0.0
    %1269 = vmatpush1.msra.mxu0 0.0
    %1270 = vmatprep.subr.mxu0 0.0
    %1271 = vmatpush1.msra.mxu0 0.0
    %1272 = vmatprep.subr.mxu0 0.0
    %1273 = vmatpush1.msra.mxu0 0.0
    %1274 = vmatprep.subr.mxu0 0.0
    %1275 = vmatpush1.msra.mxu0 0.0
    %1276 = vmatprep.subr.mxu0 0.0
    %1277 = vmatpush1.msra.mxu0 0.0
    %1278 = vmatprep.subr.mxu0 0.0
    %1279 = vmatpush1.msra.mxu0 0.0
    %1280 = vmatprep.subr.mxu0 0.0
    %1281 = vmatpush1.msra.mxu0 0.0
    %1282 = vmatprep.subr.mxu0 0.0
    %1283 = vmatpush1.msra.mxu0 0.0
    %1284 = vmatprep.subr.mxu0 0.0
    %1285 = vmatpush1.msra.mxu0 0.0
    %1286 = vmatprep.subr.mxu0 0.0
    %1287 = vmatpush1.msra.mxu0 0.0
    %1288 = vmatprep.subr.mxu0 0.0
    %1289 = vmatpush1.msra.mxu0 0.0
    %1290 = vmatprep.subr.mxu0 0.0
    %1291 = vmatpush1.msra.mxu0 0.0
    %1292 = vmatprep.mubr.f32.mxu0 0.0
    %1293 = vmatmul.mubr.f32.gmra.mrb[0].mxu0 %v1226
    %v1294 = vpop.f32.mrb[0].mxu0
    %v1295 = vadd.f32 0.0, %v1294
    %v1296 = vpop.f32.mrb[0].mxu0
    %1297 = vdwg.mxu0
    %1298 = vrot.lane.b32.xlu0 %v199, 48
    %v1299 = vpop.permute.xlu0 %1298
    %v1302 = vsel %vm214, %v1221, 0
    %1304 = vmatprep.subr.mxu0 0.0
    %1305 = vmatpush1.msra.mxu0 %v1299
    %1306 = vmatprep.subr.mxu0 0.0
    %1307 = vmatpush1.msra.mxu0 0.0
    %1308 = vmatprep.subr.mxu0 0.0
    %1309 = vmatpush1.msra.mxu0 0.0
    %1310 = vmatprep.subr.mxu0 0.0
    %1311 = vmatpush1.msra.mxu0 0.0
    %1312 = vmatprep.subr.mxu0 0.0
    %1313 = vmatpush1.msra.mxu0 0.0
    %1314 = vmatprep.subr.mxu0 0.0
    %1315 = vmatpush1.msra.mxu0 0.0
    %1316 = vmatprep.subr.mxu0 0.0
    %1317 = vmatpush1.msra.mxu0 0.0
    %1318 = vmatprep.subr.mxu0 0.0
    %1319 = vmatpush1.msra.mxu0 0.0
    %1320 = vmatprep.subr.mxu0 0.0
    %1321 = vmatpush1.msra.mxu0 0.0
    %1322 = vmatprep.subr.mxu0 0.0
    %1323 = vmatpush1.msra.mxu0 0.0
    %1324 = vmatprep.subr.mxu0 0.0
    %1325 = vmatpush1.msra.mxu0 0.0
    %1326 = vmatprep.subr.mxu0 0.0
    %1327 = vmatpush1.msra.mxu0 0.0
    %1328 = vmatprep.subr.mxu0 0.0
    %1329 = vmatpush1.msra.mxu0 0.0
    %1330 = vmatprep.subr.mxu0 0.0
    %1331 = vmatpush1.msra.mxu0 0.0
    %1332 = vmatprep.subr.mxu0 0.0
    %1333 = vmatpush1.msra.mxu0 0.0
    %1334 = vmatprep.subr.mxu0 0.0
    %1335 = vmatpush1.msra.mxu0 0.0
    %1336 = vmatprep.subr.mxu0 0.0
    %1337 = vmatpush1.msra.mxu0 0.0
    %1338 = vmatprep.subr.mxu0 0.0
    %1339 = vmatpush1.msra.mxu0 0.0
    %1340 = vmatprep.subr.mxu0 0.0
    %1341 = vmatpush1.msra.mxu0 0.0
    %1342 = vmatprep.subr.mxu0 0.0
    %1343 = vmatpush1.msra.mxu0 0.0
    %1344 = vmatprep.subr.mxu0 0.0
    %1345 = vmatpush1.msra.mxu0 0.0
    %1346 = vmatprep.subr.mxu0 0.0
    %1347 = vmatpush1.msra.mxu0 0.0
    %1348 = vmatprep.subr.mxu0 0.0
    %1349 = vmatpush1.msra.mxu0 0.0
    %1350 = vmatprep.subr.mxu0 0.0
    %1351 = vmatpush1.msra.mxu0 0.0
    %1352 = vmatprep.subr.mxu0 0.0
    %1353 = vmatpush1.msra.mxu0 0.0
    %1354 = vmatprep.subr.mxu0 0.0
    %1355 = vmatpush1.msra.mxu0 0.0
    %1356 = vmatprep.subr.mxu0 0.0
    %1357 = vmatpush1.msra.mxu0 0.0
    %1358 = vmatprep.subr.mxu0 0.0
    %1359 = vmatpush1.msra.mxu0 0.0
    %1360 = vmatprep.subr.mxu0 0.0
    %1361 = vmatpush1.msra.mxu0 0.0
    %1362 = vmatprep.subr.mxu0 0.0
    %1363 = vmatpush1.msra.mxu0 0.0
    %1364 = vmatprep.subr.mxu0 0.0
    %1365 = vmatpush1.msra.mxu0 0.0
    %1366 = vmatprep.subr.mxu0 0.0
    %1367 = vmatpush1.msra.mxu0 0.0
    %1368 = vmatprep.mubr.f32.mxu0 0.0
    %1369 = vmatmul.mubr.f32.gmra.mrb[0].mxu0 %v1302
    %v1370 = vpop.f32.mrb[0].mxu0
    %v1371 = vadd.f32 0.0, %v1370
    %v1372 = vpop.f32.mrb[0].mxu0
    %1373 = vdwg.mxu0
    %v1374 = vld [vmem:[%s5 + $0x10] sm:$0xff]
    %v1376 = vsel %vm214, %v1295, 0
    %v1379 = vsel %vm214, %v1371, 0
    %1381 = vmatprep.subr.mxu0 0.0
    %1382 = vmatpush1.msra.mxu0 %v1374
    %1383 = vmatprep.subr.mxu0 0.0
    %1384 = vmatpush1.msra.mxu0 0.0
    %1385 = vmatprep.subr.mxu0 0.0
    %1386 = vmatpush1.msra.mxu0 0.0
    %1387 = vmatprep.subr.mxu0 0.0
    %1388 = vmatpush1.msra.mxu0 0.0
    %1389 = vmatprep.subr.mxu0 0.0
    %1390 = vmatpush1.msra.mxu0 0.0
    %1391 = vmatprep.subr.mxu0 0.0
    %1392 = vmatpush1.msra.mxu0 0.0
    %1393 = vmatprep.subr.mxu0 0.0
    %1394 = vmatpush1.msra.mxu0 0.0
    %1395 = vmatprep.subr.mxu0 0.0
    %1396 = vmatpush1.msra.mxu0 0.0
    %1397 = vmatprep.subr.mxu0 0.0
    %1398 = vmatpush1.msra.mxu0 0.0
    %1399 = vmatprep.subr.mxu0 0.0
    %1400 = vmatpush1.msra.mxu0 0.0
    %1401 = vmatprep.subr.mxu0 0.0
    %1402 = vmatpush1.msra.mxu0 0.0
    %1403 = vmatprep.subr.mxu0 0.0
    %1404 = vmatpush1.msra.mxu0 0.0
    %1405 = vmatprep.subr.mxu0 0.0
    %1406 = vmatpush1.msra.mxu0 0.0
    %1407 = vmatprep.subr.mxu0 0.0
    %1408 = vmatpush1.msra.mxu0 0.0
    %1409 = vmatprep.subr.mxu0 0.0
    %1410 = vmatpush1.msra.mxu0 0.0
    %1411 = vmatprep.subr.mxu0 0.0
    %1412 = vmatpush1.msra.mxu0 0.0
    %1413 = vmatprep.subr.mxu0 0.0
    %1414 = vmatpush1.msra.mxu0 0.0
    %1415 = vmatprep.subr.mxu0 0.0
    %1416 = vmatpush1.msra.mxu0 0.0
    %1417 = vmatprep.subr.mxu0 0.0
    %1418 = vmatpush1.msra.mxu0 0.0
    %1419 = vmatprep.subr.mxu0 0.0
    %1420 = vmatpush1.msra.mxu0 0.0
    %1421 = vmatprep.subr.mxu0 0.0
    %1422 = vmatpush1.msra.mxu0 0.0
    %1423 = vmatprep.subr.mxu0 0.0
    %1424 = vmatpush1.msra.mxu0 0.0
    %1425 = vmatprep.subr.mxu0 0.0
    %1426 = vmatpush1.msra.mxu0 0.0
    %1427 = vmatprep.subr.mxu0 0.0
    %1428 = vmatpush1.msra.mxu0 0.0
    %1429 = vmatprep.subr.mxu0 0.0
    %1430 = vmatpush1.msra.mxu0 0.0
    %1431 = vmatprep.subr.mxu0 0.0
    %1432 = vmatpush1.msra.mxu0 0.0
    %1433 = vmatprep.subr.mxu0 0.0
    %1434 = vmatpush1.msra.mxu0 0.0
    %1435 = vmatprep.subr.mxu0 0.0
    %1436 = vmatpush1.msra.mxu0 0.0
    %1437 = vmatprep.subr.mxu0 0.0
    %1438 = vmatpush1.msra.mxu0 0.0
    %1439 = vmatprep.subr.mxu0 0.0
    %1440 = vmatpush1.msra.mxu0 0.0
    %1441 = vmatprep.subr.mxu0 0.0
    %1442 = vmatpush1.msra.mxu0 0.0
    %1443 = vmatprep.subr.mxu0 0.0
    %1444 = vmatpush1.msra.mxu0 0.0
    %1445 = vmatprep.mubr.f32.mxu0 0.0
    %1446 = vmatmul.mubr.f32.gmra.mrb[0].mxu0 %v1376
    %v1447 = vpop.f32.mrb[0].mxu0
    %v1448 = vadd.f32 0.0, %v1447
    %v1449 = vpop.f32.mrb[0].mxu0
    %1450 = vmatprep.mubr.f32.mxu0 0.0
    %1451 = vmatmul.mubr.f32.gmra.mrb[0].mxu0 %v1379
    %v1452 = vpop.f32.mrb[0].mxu0
    %v1453 = vadd.f32 0.0, %v1452
    %v1454 = vpop.f32.mrb[0].mxu0
    %1455 = vdwg.mxu0
    %v1456 = vadd.f32 %v1040, %v1448
    %v1457 = vadd.f32 %v1041, %v1453
    %1458 = vrot.lane.b32.xlu0 %v194, 104
    %v1459 = vpop.permute.xlu0 %1458
    %1460 = vrot.lane.b32.xlu0 %v194, 72
    %v1461 = vpop.permute.xlu0 %1460
    %v1462 = vsel %vm214, %v1459, 0
    %v1464 = vsel %vm214, %v1461, 0
    %1466 = vmatprep.subr.mxu0 0.0
    %1467 = vmatpush1.xpose.msra.mxu0 %v1464
    %1468 = vmatprep.subr.mxu0 0.0
    %1469 = vmatpush1.xpose.msra.mxu0 0.0
    %1470 = vmatprep.subr.mxu0 0.0
    %1471 = vmatpush1.xpose.msra.mxu0 0.0
    %1472 = vmatprep.subr.mxu0 0.0
    %1473 = vmatpush1.xpose.msra.mxu0 0.0
    %1474 = vmatprep.subr.mxu0 0.0
    %1475 = vmatpush1.xpose.msra.mxu0 0.0
    %1476 = vmatprep.subr.mxu0 0.0
    %1477 = vmatpush1.xpose.msra.mxu0 0.0
    %1478 = vmatprep.subr.mxu0 0.0
    %1479 = vmatpush1.xpose.msra.mxu0 0.0
    %1480 = vmatprep.subr.mxu0 0.0
    %1481 = vmatpush1.xpose.msra.mxu0 0.0
    %1482 = vmatprep.subr.mxu0 0.0
    %1483 = vmatpush1.xpose.msra.mxu0 0.0
    %1484 = vmatprep.subr.mxu0 0.0
    %1485 = vmatpush1.xpose.msra.mxu0 0.0
    %1486 = vmatprep.subr.mxu0 0.0
    %1487 = vmatpush1.xpose.msra.mxu0 0.0
    %1488 = vmatprep.subr.mxu0 0.0
    %1489 = vmatpush1.xpose.msra.mxu0 0.0
    %1490 = vmatprep.subr.mxu0 0.0
    %1491 = vmatpush1.xpose.msra.mxu0 0.0
    %1492 = vmatprep.subr.mxu0 0.0
    %1493 = vmatpush1.xpose.msra.mxu0 0.0
    %1494 = vmatprep.subr.mxu0 0.0
    %1495 = vmatpush1.xpose.msra.mxu0 0.0
    %1496 = vmatprep.subr.mxu0 0.0
    %1497 = vmatpush1.xpose.msra.mxu0 0.0
    %1498 = vmatprep.subr.mxu0 0.0
    %1499 = vmatpush1.xpose.msra.mxu0 0.0
    %1500 = vmatprep.subr.mxu0 0.0
    %1501 = vmatpush1.xpose.msra.mxu0 0.0
    %1502 = vmatprep.subr.mxu0 0.0
    %1503 = vmatpush1.xpose.msra.mxu0 0.0
    %1504 = vmatprep.subr.mxu0 0.0
    %1505 = vmatpush1.xpose.msra.mxu0 0.0
    %1506 = vmatprep.subr.mxu0 0.0
    %1507 = vmatpush1.xpose.msra.mxu0 0.0
    %1508 = vmatprep.subr.mxu0 0.0
    %1509 = vmatpush1.xpose.msra.mxu0 0.0
    %1510 = vmatprep.subr.mxu0 0.0
    %1511 = vmatpush1.xpose.msra.mxu0 0.0
    %1512 = vmatprep.subr.mxu0 0.0
    %1513 = vmatpush1.xpose.msra.mxu0 0.0
    %1514 = vmatprep.subr.mxu0 0.0
    %1515 = vmatpush1.xpose.msra.mxu0 0.0
    %1516 = vmatprep.subr.mxu0 0.0
    %1517 = vmatpush1.xpose.msra.mxu0 0.0
    %1518 = vmatprep.subr.mxu0 0.0
    %1519 = vmatpush1.xpose.msra.mxu0 0.0
    %1520 = vmatprep.subr.mxu0 0.0
    %1521 = vmatpush1.xpose.msra.mxu0 0.0
    %1522 = vmatprep.subr.mxu0 0.0
    %1523 = vmatpush1.xpose.msra.mxu0 0.0
    %1524 = vmatprep.subr.mxu0 0.0
    %1525 = vmatpush1.xpose.msra.mxu0 0.0
    %1526 = vmatprep.subr.mxu0 0.0
    %1527 = vmatpush1.xpose.msra.mxu0 0.0
    %1528 = vmatprep.subr.mxu0 0.0
    %1529 = vmatpush1.xpose.msra.mxu0 0.0
    %1530 = vmatprep.mubr.f32.mxu0 0.0
    %1531 = vmatmul.mubr.f32.gmra.mrb[0].mxu0 %v1462
    %v1532 = vpop.f32.mrb[0].mxu0
    %v1533 = vadd.f32 0.0, %v1532
    %v1534 = vpop.f32.mrb[0].mxu0
    %1535 = vdwg.mxu0
    %1536 = vrot.lane.b32.xlu0 %v199, 104
    %v1537 = vpop.permute.xlu0 %1536
    %1538 = vrot.lane.b32.xlu0 %v199, 72
    %v1539 = vpop.permute.xlu0 %1538
    %v1540 = vsel %vm214, %v1537, 0
    %v1542 = vsel %vm214, %v1539, 0
    %1544 = vmatprep.subr.mxu0 0.0
    %1545 = vmatpush1.xpose.msra.mxu0 %v1542
    %1546 = vmatprep.subr.mxu0 0.0
    %1547 = vmatpush1.xpose.msra.mxu0 0.0
    %1548 = vmatprep.subr.mxu0 0.0
    %1549 = vmatpush1.xpose.msra.mxu0 0.0
    %1550 = vmatprep.subr.mxu0 0.0
    %1551 = vmatpush1.xpose.msra.mxu0 0.0
    %1552 = vmatprep.subr.mxu0 0.0
    %1553 = vmatpush1.xpose.msra.mxu0 0.0
    %1554 = vmatprep.subr.mxu0 0.0
    %1555 = vmatpush1.xpose.msra.mxu0 0.0
    %1556 = vmatprep.subr.mxu0 0.0
    %1557 = vmatpush1.xpose.msra.mxu0 0.0
    %1558 = vmatprep.subr.mxu0 0.0
    %1559 = vmatpush1.xpose.msra.mxu0 0.0
    %1560 = vmatprep.subr.mxu0 0.0
    %1561 = vmatpush1.xpose.msra.mxu0 0.0
    %1562 = vmatprep.subr.mxu0 0.0
    %1563 = vmatpush1.xpose.msra.mxu0 0.0
    %1564 = vmatprep.subr.mxu0 0.0
    %1565 = vmatpush1.xpose.msra.mxu0 0.0
    %1566 = vmatprep.subr.mxu0 0.0
    %1567 = vmatpush1.xpose.msra.mxu0 0.0
    %1568 = vmatprep.subr.mxu0 0.0
    %1569 = vmatpush1.xpose.msra.mxu0 0.0
    %1570 = vmatprep.subr.mxu0 0.0
    %1571 = vmatpush1.xpose.msra.mxu0 0.0
    %1572 = vmatprep.subr.mxu0 0.0
    %1573 = vmatpush1.xpose.msra.mxu0 0.0
    %1574 = vmatprep.subr.mxu0 0.0
    %1575 = vmatpush1.xpose.msra.mxu0 0.0
    %1576 = vmatprep.subr.mxu0 0.0
    %1577 = vmatpush1.xpose.msra.mxu0 0.0
    %1578 = vmatprep.subr.mxu0 0.0
    %1579 = vmatpush1.xpose.msra.mxu0 0.0
    %1580 = vmatprep.subr.mxu0 0.0
    %1581 = vmatpush1.xpose.msra.mxu0 0.0
    %1582 = vmatprep.subr.mxu0 0.0
    %1583 = vmatpush1.xpose.msra.mxu0 0.0
    %1584 = vmatprep.subr.mxu0 0.0
    %1585 = vmatpush1.xpose.msra.mxu0 0.0
    %1586 = vmatprep.subr.mxu0 0.0
    %1587 = vmatpush1.xpose.msra.mxu0 0.0
    %1588 = vmatprep.subr.mxu0 0.0
    %1589 = vmatpush1.xpose.msra.mxu0 0.0
    %1590 = vmatprep.subr.mxu0 0.0
    %1591 = vmatpush1.xpose.msra.mxu0 0.0
    %1592 = vmatprep.subr.mxu0 0.0
    %1593 = vmatpush1.xpose.msra.mxu0 0.0
    %1594 = vmatprep.subr.mxu0 0.0
    %1595 = vmatpush1.xpose.msra.mxu0 0.0
    %1596 = vmatprep.subr.mxu0 0.0
    %1597 = vmatpush1.xpose.msra.mxu0 0.0
    %1598 = vmatprep.subr.mxu0 0.0
    %1599 = vmatpush1.xpose.msra.mxu0 0.0
    %1600 = vmatprep.subr.mxu0 0.0
    %1601 = vmatpush1.xpose.msra.mxu0 0.0
    %1602 = vmatprep.subr.mxu0 0.0
    %1603 = vmatpush1.xpose.msra.mxu0 0.0
    %1604 = vmatprep.subr.mxu0 0.0
    %1605 = vmatpush1.xpose.msra.mxu0 0.0
    %1606 = vmatprep.subr.mxu0 0.0
    %1607 = vmatpush1.xpose.msra.mxu0 0.0
    %1608 = vmatprep.mubr.f32.mxu0 0.0
    %1609 = vmatmul.mubr.f32.gmra.mrb[0].mxu0 %v1540
    %v1610 = vpop.f32.mrb[0].mxu0
    %v1611 = vadd.f32 0.0, %v1610
    %v1612 = vpop.f32.mrb[0].mxu0
    %1613 = vdwg.mxu0
    %v1614 = vmul.f32 %v1533, 0.35355338
    %v1615 = vmul.f32 %v1611, 0.35355338
    %v1616 = vsel %vm214, %v1614, -inf
    %1617 = vmax.xlane.f32.xlu0 %v1616
    %v1618 = vpop.xlane.xlu0 %1617
    %v1619 = vsel %vm214, %v1615, -inf
    %1620 = vmax.xlane.f32.xlu0 %v1619
    %v1621 = vpop.xlane.xlu0 %1620
    %v1622 = vsub.f32 %v1614, %v1618
    %v1623 = vsub.f32 %v1615, %v1621
    %v1624 = vmul.f32 %v1622, 1.442695
    %v1625 = vpow.pop %v1624
    %v1626 = vmul.f32 %v1623, 1.442695
    %v1627 = vpow.pop %v1626
    %v1628 = vsel %vm214, %v1625, 0.0
    %1629 = vadd.xlane.f32.xlu0 %v1628
    %v1630 = vpop.xlane.xlu0 %1629
    %v1631 = vsel %vm214, %v1627, 0.0
    %1632 = vadd.xlane.f32.xlu0 %v1631
    %v1633 = vpop.xlane.xlu0 %1632
    %v1634 = vrcp.pop %v1630
    %v1635 = vrcp.pop %v1633
    %v1636 = vmul.f32 %v1625, %v1634
    %v1637 = vmul.f32 %v1627, %v1635
    %1638 = vrot.lane.b32.xlu0 %v194, 40
    %v1639 = vpop.permute.xlu0 %1638
    %v1642 = vsel %vm214, %v1636, 0
    %1644 = vmatprep.subr.mxu0 0.0
    %1645 = vmatpush1.msra.mxu0 %v1639
    %1646 = vmatprep.subr.mxu0 0.0
    %1647 = vmatpush1.msra.mxu0 0.0
    %1648 = vmatprep.subr.mxu0 0.0
    %1649 = vmatpush1.msra.mxu0 0.0
    %1650 = vmatprep.subr.mxu0 0.0
    %1651 = vmatpush1.msra.mxu0 0.0
    %1652 = vmatprep.subr.mxu0 0.0
    %1653 = vmatpush1.msra.mxu0 0.0
    %1654 = vmatprep.subr.mxu0 0.0
    %1655 = vmatpush1.msra.mxu0 0.0
    %1656 = vmatprep.subr.mxu0 0.0
    %1657 = vmatpush1.msra.mxu0 0.0
    %1658 = vmatprep.subr.mxu0 0.0
    %1659 = vmatpush1.msra.mxu0 0.0
    %1660 = vmatprep.subr.mxu0 0.0
    %1661 = vmatpush1.msra.mxu0 0.0
    %1662 = vmatprep.subr.mxu0 0.0
    %1663 = vmatpush1.msra.mxu0 0.0
    %1664 = vmatprep.subr.mxu0 0.0
    %1665 = vmatpush1.msra.mxu0 0.0
    %1666 = vmatprep.subr.mxu0 0.0
    %1667 = vmatpush1.msra.mxu0 0.0
    %1668 = vmatprep.subr.mxu0 0.0
    %1669 = vmatpush1.msra.mxu0 0.0
    %1670 = vmatprep.subr.mxu0 0.0
    %1671 = vmatpush1.msra.mxu0 0.0
    %1672 = vmatprep.subr.mxu0 0.0
    %1673 = vmatpush1.msra.mxu0 0.0
    %1674 = vmatprep.subr.mxu0 0.0
    %1675 = vmatpush1.msra.mxu0 0.0
    %1676 = vmatprep.subr.mxu0 0.0
    %1677 = vmatpush1.msra.mxu0 0.0
    %1678 = vmatprep.subr.mxu0 0.0
    %1679 = vmatpush1.msra.mxu0 0.0
    %1680 = vmatprep.subr.mxu0 0.0
    %1681 = vmatpush1.msra.mxu0 0.0
    %1682 = vmatprep.subr.mxu0 0.0
    %1683 = vmatpush1.msra.mxu0 0.0
    %1684 = vmatprep.subr.mxu0 0.0
    %1685 = vmatpush1.msra.mxu0 0.0
    %1686 = vmatprep.subr.mxu0 0.0
    %1687 = vmatpush1.msra.mxu0 0.0
    %1688 = vmatprep.subr.mxu0 0.0
    %1689 = vmatpush1.msra.mxu0 0.0
    %1690 = vmatprep.subr.mxu0 0.0
    %1691 = vmatpush1.msra.mxu0 0.0
    %1692 = vmatprep.subr.mxu0 0.0
    %1693 = vmatpush1.msra.mxu0 0.0
    %1694 = vmatprep.subr.mxu0 0.0
    %1695 = vmatpush1.msra.mxu0 0.0
    %1696 = vmatprep.subr.mxu0 0.0
    %1697 = vmatpush1.msra.mxu0 0.0
    %1698 = vmatprep.subr.mxu0 0.0
    %1699 = vmatpush1.msra.mxu0 0.0
    %1700 = vmatprep.subr.mxu0 0.0
    %1701 = vmatpush1.msra.mxu0 0.0
    %1702 = vmatprep.subr.mxu0 0.0
    %1703 = vmatpush1.msra.mxu0 0.0
    %1704 = vmatprep.subr.mxu0 0.0
    %1705 = vmatpush1.msra.mxu0 0.0
    %1706 = vmatprep.subr.mxu0 0.0
    %1707 = vmatpush1.msra.mxu0 0.0
    %1708 = vmatprep.mubr.f32.mxu0 0.0
    %1709 = vmatmul.mubr.f32.gmra.mrb[0].mxu0 %v1642
    %v1710 = vpop.f32.mrb[0].mxu0
    %v1711 = vadd.f32 0.0, %v1710
    %v1712 = vpop.f32.mrb[0].mxu0
    %1713 = vdwg.mxu0
    %1714 = vrot.lane.b32.xlu0 %v199, 40
    %v1715 = vpop.permute.xlu0 %1714
    %v1718 = vsel %vm214, %v1637, 0
    %1720 = vmatprep.subr.mxu0 0.0
    %1721 = vmatpush1.msra.mxu0 %v1715
    %1722 = vmatprep.subr.mxu0 0.0
    %1723 = vmatpush1.msra.mxu0 0.0
    %1724 = vmatprep.subr.mxu0 0.0
    %1725 = vmatpush1.msra.mxu0 0.0
    %1726 = vmatprep.subr.mxu0 0.0
    %1727 = vmatpush1.msra.mxu0 0.0
    %1728 = vmatprep.subr.mxu0 0.0
    %1729 = vmatpush1.msra.mxu0 0.0
    %1730 = vmatprep.subr.mxu0 0.0
    %1731 = vmatpush1.msra.mxu0 0.0
    %1732 = vmatprep.subr.mxu0 0.0
    %1733 = vmatpush1.msra.mxu0 0.0
    %1734 = vmatprep.subr.mxu0 0.0
    %1735 = vmatpush1.msra.mxu0 0.0
    %1736 = vmatprep.subr.mxu0 0.0
    %1737 = vmatpush1.msra.mxu0 0.0
    %1738 = vmatprep.subr.mxu0 0.0
    %1739 = vmatpush1.msra.mxu0 0.0
    %1740 = vmatprep.subr.mxu0 0.0
    %1741 = vmatpush1.msra.mxu0 0.0
    %1742 = vmatprep.subr.mxu0 0.0
    %1743 = vmatpush1.msra.mxu0 0.0
    %1744 = vmatprep.subr.mxu0 0.0
    %1745 = vmatpush1.msra.mxu0 0.0
    %1746 = vmatprep.subr.mxu0 0.0
    %1747 = vmatpush1.msra.mxu0 0.0
    %1748 = vmatprep.subr.mxu0 0.0
    %1749 = vmatpush1.msra.mxu0 0.0
    %1750 = vmatprep.subr.mxu0 0.0
    %1751 = vmatpush1.msra.mxu0 0.0
    %1752 = vmatprep.subr.mxu0 0.0
    %1753 = vmatpush1.msra.mxu0 0.0
    %1754 = vmatprep.subr.mxu0 0.0
    %1755 = vmatpush1.msra.mxu0 0.0
    %1756 = vmatprep.subr.mxu0 0.0
    %1757 = vmatpush1.msra.mxu0 0.0
    %1758 = vmatprep.subr.mxu0 0.0
    %1759 = vmatpush1.msra.mxu0 0.0
    %1760 = vmatprep.subr.mxu0 0.0
    %1761 = vmatpush1.msra.mxu0 0.0
    %1762 = vmatprep.subr.mxu0 0.0
    %1763 = vmatpush1.msra.mxu0 0.0
    %1764 = vmatprep.subr.mxu0 0.0
    %1765 = vmatpush1.msra.mxu0 0.0
    %1766 = vmatprep.subr.mxu0 0.0
    %1767 = vmatpush1.msra.mxu0 0.0
    %1768 = vmatprep.subr.mxu0 0.0
    %1769 = vmatpush1.msra.mxu0 0.0
    %1770 = vmatprep.subr.mxu0 0.0
    %1771 = vmatpush1.msra.mxu0 0.0
    %1772 = vmatprep.subr.mxu0 0.0
    %1773 = vmatpush1.msra.mxu0 0.0
    %1774 = vmatprep.subr.mxu0 0.0
    %1775 = vmatpush1.msra.mxu0 0.0
    %1776 = vmatprep.subr.mxu0 0.0
    %1777 = vmatpush1.msra.mxu0 0.0
    %1778 = vmatprep.subr.mxu0 0.0
    %1779 = vmatpush1.msra.mxu0 0.0
    %1780 = vmatprep.subr.mxu0 0.0
    %1781 = vmatpush1.msra.mxu0 0.0
    %1782 = vmatprep.subr.mxu0 0.0
    %1783 = vmatpush1.msra.mxu0 0.0
    %1784 = vmatprep.mubr.f32.mxu0 0.0
    %1785 = vmatmul.mubr.f32.gmra.mrb[0].mxu0 %v1718
    %v1786 = vpop.f32.mrb[0].mxu0
    %v1787 = vadd.f32 0.0, %v1786
    %v1788 = vpop.f32.mrb[0].mxu0
    %1789 = vdwg.mxu0
    %v1790 = vld [vmem:[%s5 + $0x18] sm:$0xff]
    %v1792 = vsel %vm214, %v1711, 0
    %v1795 = vsel %vm214, %v1787, 0
    %1797 = vmatprep.subr.mxu0 0.0
    %1798 = vmatpush1.msra.mxu0 %v1790
    %1799 = vmatprep.subr.mxu0 0.0
    %1800 = vmatpush1.msra.mxu0 0.0
    %1801 = vmatprep.subr.mxu0 0.0
    %1802 = vmatpush1.msra.mxu0 0.0
    %1803 = vmatprep.subr.mxu0 0.0
    %1804 = vmatpush1.msra.mxu0 0.0
    %1805 = vmatprep.subr.mxu0 0.0
    %1806 = vmatpush1.msra.mxu0 0.0
    %1807 = vmatprep.subr.mxu0 0.0
    %1808 = vmatpush1.msra.mxu0 0.0
    %1809 = vmatprep.subr.mxu0 0.0
    %1810 = vmatpush1.msra.mxu0 0.0
    %1811 = vmatprep.subr.mxu0 0.0
    %1812 = vmatpush1.msra.mxu0 0.0
    %1813 = vmatprep.subr.mxu0 0.0
    %1814 = vmatpush1.msra.mxu0 0.0
    %1815 = vmatprep.subr.mxu0 0.0
    %1816 = vmatpush1.msra.mxu0 0.0
    %1817 = vmatprep.subr.mxu0 0.0
    %1818 = vmatpush1.msra.mxu0 0.0
    %1819 = vmatprep.subr.mxu0 0.0
    %1820 = vmatpush1.msra.mxu0 0.0
    %1821 = vmatprep.subr.mxu0 0.0
    %1822 = vmatpush1.msra.mxu0 0.0
    %1823 = vmatprep.subr.mxu0 0.0
    %1824 = vmatpush1.msra.mxu0 0.0
    %1825 = vmatprep.subr.mxu0 0.0
    %1826 = vmatpush1.msra.mxu0 0.0
    %1827 = vmatprep.subr.mxu0 0.0
    %1828 = vmatpush1.msra.mxu0 0.0
    %1829 = vmatprep.subr.mxu0 0.0
    %1830 = vmatpush1.msra.mxu0 0.0
    %1831 = vmatprep.subr.mxu0 0.0
    %1832 = vmatpush1.msra.mxu0 0.0
    %1833 = vmatprep.subr.mxu0 0.0
    %1834 = vmatpush1.msra.mxu0 0.0
    %1835 = vmatprep.subr.mxu0 0.0
    %1836 = vmatpush1.msra.mxu0 0.0
    %1837 = vmatprep.subr.mxu0 0.0
    %1838 = vmatpush1.msra.mxu0 0.0
    %1839 = vmatprep.subr.mxu0 0.0
    %1840 = vmatpush1.msra.mxu0 0.0
    %1841 = vmatprep.subr.mxu0 0.0
    %1842 = vmatpush1.msra.mxu0 0.0
    %1843 = vmatprep.subr.mxu0 0.0
    %1844 = vmatpush1.msra.mxu0 0.0
    %1845 = vmatprep.subr.mxu0 0.0
    %1846 = vmatpush1.msra.mxu0 0.0
    %1847 = vmatprep.subr.mxu0 0.0
    %1848 = vmatpush1.msra.mxu0 0.0
    %1849 = vmatprep.subr.mxu0 0.0
    %1850 = vmatpush1.msra.mxu0 0.0
    %1851 = vmatprep.subr.mxu0 0.0
    %1852 = vmatpush1.msra.mxu0 0.0
    %1853 = vmatprep.subr.mxu0 0.0
    %1854 = vmatpush1.msra.mxu0 0.0
    %1855 = vmatprep.subr.mxu0 0.0
    %1856 = vmatpush1.msra.mxu0 0.0
    %1857 = vmatprep.subr.mxu0 0.0
    %1858 = vmatpush1.msra.mxu0 0.0
    %1859 = vmatprep.subr.mxu0 0.0
    %1860 = vmatpush1.msra.mxu0 0.0
    %1861 = vmatprep.mubr.f32.mxu0 0.0
    %1862 = vmatmul.mubr.f32.gmra.mrb[0].mxu0 %v1792
    %v1863 = vpop.f32.mrb[0].mxu0
    %v1864 = vadd.f32 0.0, %v1863
    %v1865 = vpop.f32.mrb[0].mxu0
    %1866 = vmatprep.mubr.f32.mxu0 0.0
    %1867 = vmatmul.mubr.f32.gmra.mrb[0].mxu0 %v1795
    %v1868 = vpop.f32.mrb[0].mxu0
    %v1869 = vadd.f32 0.0, %v1868
    %v1870 = vpop.f32.mrb[0].mxu0
    %1871 = vdwg.mxu0
    %v1872 = vadd.f32 %v1456, %v1864
    %v1873 = vadd.f32 %v1457, %v1869
    %v1874 = vld [vmem:[%s7] sm:$0x1]
    %v1875 = vld [vmem:[%s8] sm:$0x1]
    %v1876 = vsel %vm63, %v1872, 0.0
    %1877 = vadd.xlane.f32.xlu0 %v1876
    %v1878 = vpop.xlane.xlu0 %1877
    %v1879 = vsel %vm63, %v1873, 0.0
    %1880 = vadd.xlane.f32.xlu0 %v1879
    %v1881 = vpop.xlane.xlu0 %1880
    %v1882 = vmul.f32 %v1872, %v1872
    %v1883 = vmul.f32 %v1873, %v1873
    %v1884 = vsel %vm63, %v1882, 0.0
    %1885 = vadd.xlane.f32.xlu0 %v1884
    %v1886 = vpop.xlane.xlu0 %1885
    %v1887 = vsel %vm63, %v1883, 0.0
    %1888 = vadd.xlane.f32.xlu0 %v1887
    %v1889 = vpop.xlane.xlu0 %1888
    %v1890 = vmul.f32 %v1878, 0.03125
    %v1891 = vmul.f32 %v1881, 0.03125
    %v1892 = vmul.f32 %v1886, 0.03125
    %v1893 = vmul.f32 %v1889, 0.03125
    %v1894 = vmul.f32 %v1890, %v1890
    %v1895 = vmul.f32 %v1891, %v1891
    %v1896 = vsub.f32 %v1892, %v1894
    %v1897 = vsub.f32 %v1893, %v1895
    %v1898 = vsub.f32 %v1872, %v1890
    %v1899 = vsub.f32 %v1873, %v1891
    %v1900 = vadd.f32 %v1896, 1e-05
    %v1901 = vadd.f32 %v1897, 1e-05
    %v1902 = vrsqrt.pop %v1900
    %v1903 = vrsqrt.pop %v1901
    %v1904 = vmul.f32 %v1898, %v1902
    %v1905 = vmul.f32 %v1899, %v1903
    %v1907 = vlaneseq
    %v1908 = vshrl.u32 %v1907, 7
    %v1909 = vsub.s32 0, %v1908
    %v1910 = vrot.slane %v1874, %v1909
    %v1912 = vmul.f32 %v1904, %v1910
    %v1913 = vmul.f32 %v1905, %v1910
    %v1915 = vlaneseq
    %v1916 = vshrl.u32 %v1915, 7
    %v1917 = vsub.s32 0, %v1916
    %v1918 = vrot.slane %v1875, %v1917
    %v1920 = vadd.f32 %v1912, %v1918
    %v1921 = vadd.f32 %v1913, %v1918
    %v1922 = vld [vmem:[%s9] sm:$0xff]
    %v1923 = vld [vmem:[%s9 + $0x8] sm:$0xff]
    %v1924 = vld [vmem:[%s9 + $0x10] sm:$0xff]
    %v1925 = vld [vmem:[%s9 + $0x18] sm:$0xff]
    %v1926 = vld [vmem:[%s10] sm:$0x1]
    %v1928 = vlaneseq
    %v1929 = vshrl.u32 %v1928, 7
    %v1930 = vsub.s32 0, %v1929
    %v1931 = vrot.slane %v1926, %v1930
    %v1934 = vsel %vm63, %v1920, 0
    %v1937 = vsel %vm63, %v1921, 0
    %1939 = vmatprep.subr.mxu0 0.0
    %1940 = vmatpush1.msra.mxu0 %v1922
    %1941 = vmatprep.subr.mxu0 0.0
    %1942 = vmatpush1.msra.mxu0 %v1923
    %1943 = vmatprep.subr.mxu0 0.0
    %1944 = vmatpush1.msra.mxu0 %v1924
    %1945 = vmatprep.subr.mxu0 0.0
    %1946 = vmatpush1.msra.mxu0 %v1925
    %1947 = vmatprep.subr.mxu0 0.0
    %1948 = vmatpush1.msra.mxu0 0.0
    %1949 = vmatprep.subr.mxu0 0.0
    %1950 = vmatpush1.msra.mxu0 0.0
    %1951 = vmatprep.subr.mxu0 0.0
    %1952 = vmatpush1.msra.mxu0 0.0
    %1953 = vmatprep.subr.mxu0 0.0
    %1954 = vmatpush1.msra.mxu0 0.0
    %1955 = vmatprep.subr.mxu0 0.0
    %1956 = vmatpush1.msra.mxu0 0.0
    %1957 = vmatprep.subr.mxu0 0.0
    %1958 = vmatpush1.msra.mxu0 0.0
    %1959 = vmatprep.subr.mxu0 0.0
    %1960 = vmatpush1.msra.mxu0 0.0
    %1961 = vmatprep.subr.mxu0 0.0
    %1962 = vmatpush1.msra.mxu0 0.0
    %1963 = vmatprep.subr.mxu0 0.0
    %1964 = vmatpush1.msra.mxu0 0.0
    %1965 = vmatprep.subr.mxu0 0.0
    %1966 = vmatpush1.msra.mxu0 0.0
    %1967 = vmatprep.subr.mxu0 0.0
    %1968 = vmatpush1.msra.mxu0 0.0
    %1969 = vmatprep.subr.mxu0 0.0
    %1970 = vmatpush1.msra.mxu0 0.0
    %1971 = vmatprep.subr.mxu0 0.0
    %1972 = vmatpush1.msra.mxu0 0.0
    %1973 = vmatprep.subr.mxu0 0.0
    %1974 = vmatpush1.msra.mxu0 0.0
    %1975 = vmatprep.subr.mxu0 0.0
    %1976 = vmatpush1.msra.mxu0 0.0
    %1977 = vmatprep.subr.mxu0 0.0
    %1978 = vmatpush1.msra.mxu0 0.0
    %1979 = vmatprep.subr.mxu0 0.0
    %1980 = vmatpush1.msra.mxu0 0.0
    %1981 = vmatprep.subr.mxu0 0.0
    %1982 = vmatpush1.msra.mxu0 0.0
    %1983 = vmatprep.subr.mxu0 0.0
    %1984 = vmatpush1.msra.mxu0 0.0
    %1985 = vmatprep.subr.mxu0 0.0
    %1986 = vmatpush1.msra.mxu0 0.0
    %1987 = vmatprep.subr.mxu0 0.0
    %1988 = vmatpush1.msra.mxu0 0.0
    %1989 = vmatprep.subr.mxu0 0.0
    %1990 = vmatpush1.msra.mxu0 0.0
    %1991 = vmatprep.subr.mxu0 0.0
    %1992 = vmatpush1.msra.mxu0 0.0
    %1993 = vmatprep.subr.mxu0 0.0
    %1994 = vmatpush1.msra.mxu0 0.0
    %1995 = vmatprep.subr.mxu0 0.0
    %1996 = vmatpush1.msra.mxu0 0.0
    %1997 = vmatprep.subr.mxu0 0.0
    %1998 = vmatpush1.msra.mxu0 0.0
    %1999 = vmatprep.subr.mxu0 0.0
    %2000 = vmatpush1.msra.mxu0 0.0
    %2001 = vmatprep.subr.mxu0 0.0
    %2002 = vmatpush1.msra.mxu0 0.0
    %2003 = vmatprep.mubr.f32.mxu0 0.0
    %2004 = vmatmul.mubr.f32.gmra.mrb[0].mxu0 %v1934
    %v2005 = vpop.f32.mrb[0].mxu0
    %v2006 = vadd.f32 %v1931, %v2005
    %v2007 = vpop.f32.mrb[0].mxu0
    %2008 = vmatprep.mubr.f32.mxu0 0.0
    %2009 = vmatmul.mubr.f32.gmra.mrb[0].mxu0 %v1937
    %v2010 = vpop.f32.mrb[0].mxu0
    %v2011 = vadd.f32 %v1931, %v2010
    %v2012 = vpop.f32.mrb[0].mxu0
    %2013 = vdwg.mxu0
    %v2014 = vmul.f32 %v2006, 0.5
    %v2015 = vmul.f32 %v2011, 0.5
    %v2016 = vmul.f32 %v2006, 0.70710677
    %v2017 = vmul.f32 %v2011, 0.70710677
    %v2018 = verf.f32.pop %v2016
    %v2019 = verf.f32.pop %v2017
    %v2020 = vadd.f32 %v2018, 1.0
    %v2021 = vadd.f32 %v2019, 1.0
    %v2022 = vmul.f32 %v2014, %v2020
    %v2023 = vmul.f32 %v2015, %v2021
    %v2024 = vld [vmem:[%s11] sm:$0xff]
    %v2025 = vld [vmem:[%s11 + $0x8] sm:$0xff]
    %v2026 = vld [vmem:[%s11 + $0x10] sm:$0xff]
    %v2027 = vld [vmem:[%s11 + $0x18] sm:$0xff]
    %v2028 = vld [vmem:[%s11 + $0x20] sm:$0xff]
    %v2029 = vld [vmem:[%s11 + $0x28] sm:$0xff]
    %v2030 = vld [vmem:[%s11 + $0x30] sm:$0xff]
    %v2031 = vld [vmem:[%s11 + $0x38] sm:$0xff]
    %v2032 = vld [vmem:[%s12] sm:$0x1]
    %v2034 = vlaneseq
    %v2035 = vshrl.u32 %v2034, 7
    %v2036 = vsub.s32 0, %v2035
    %v2037 = vrot.slane %v2032, %v2036
    %vm2039 = vcmask 523264
    %v2041 = vsel %vm2039, %v2022, 0
    %v2044 = vsel %vm2039, %v2023, 0
    %2046 = vmatprep.subr.mxu0 0.0
    %2047 = vmatpush1.msra.mxu0 %v2024
    %2048 = vmatprep.subr.mxu0 0.0
    %2049 = vmatpush1.msra.mxu0 %v2025
    %2050 = vmatprep.subr.mxu0 0.0
    %2051 = vmatpush1.msra.mxu0 %v2026
    %2052 = vmatprep.subr.mxu0 0.0
    %2053 = vmatpush1.msra.mxu0 %v2027
    %2054 = vmatprep.subr.mxu0 0.0
    %2055 = vmatpush1.msra.mxu0 %v2028
    %2056 = vmatprep.subr.mxu0 0.0
    %2057 = vmatpush1.msra.mxu0 %v2029
    %2058 = vmatprep.subr.mxu0 0.0
    %2059 = vmatpush1.msra.mxu0 %v2030
    %2060 = vmatprep.subr.mxu0 0.0
    %2061 = vmatpush1.msra.mxu0 %v2031
    %2062 = vmatprep.subr.mxu0 0.0
    %2063 = vmatpush1.msra.mxu0 0.0
    %2064 = vmatprep.subr.mxu0 0.0
    %2065 = vmatpush1.msra.mxu0 0.0
    %2066 = vmatprep.subr.mxu0 0.0
    %2067 = vmatpush1.msra.mxu0 0.0
    %2068 = vmatprep.subr.mxu0 0.0
    %2069 = vmatpush1.msra.mxu0 0.0
    %2070 = vmatprep.subr.mxu0 0.0
    %2071 = vmatpush1.msra.mxu0 0.0
    %2072 = vmatprep.subr.mxu0 0.0
    %2073 = vmatpush1.msra.mxu0 0.0
    %2074 = vmatprep.subr.mxu0 0.0
    %2075 = vmatpush1.msra.mxu0 0.0
    %2076 = vmatprep.subr.mxu0 0.0
    %2077 = vmatpush1.msra.mxu0 0.0
    %2078 = vmatprep.subr.mxu0 0.0
    %2079 = vmatpush1.msra.mxu0 0.0
    %2080 = vmatprep.subr.mxu0 0.0
    %2081 = vmatpush1.msra.mxu0 0.0
    %2082 = vmatprep.subr.mxu0 0.0
    %2083 = vmatpush1.msra.mxu0 0.0
    %2084 = vmatprep.subr.mxu0 0.0
    %2085 = vmatpush1.msra.mxu0 0.0
    %2086 = vmatprep.subr.mxu0 0.0
    %2087 = vmatpush1.msra.mxu0 0.0
    %2088 = vmatprep.subr.mxu0 0.0
    %2089 = vmatpush1.msra.mxu0 0.0
    %2090 = vmatprep.subr.mxu0 0.0
    %2091 = vmatpush1.msra.mxu0 0.0
    %2092 = vmatprep.subr.mxu0 0.0
    %2093 = vmatpush1.msra.mxu0 0.0
    %2094 = vmatprep.subr.mxu0 0.0
    %2095 = vmatpush1.msra.mxu0 0.0
    %2096 = vmatprep.subr.mxu0 0.0
    %2097 = vmatpush1.msra.mxu0 0.0
    %2098 = vmatprep.subr.mxu0 0.0
    %2099 = vmatpush1.msra.mxu0 0.0
    %2100 = vmatprep.subr.mxu0 0.0
    %2101 = vmatpush1.msra.mxu0 0.0
    %2102 = vmatprep.subr.mxu0 0.0
    %2103 = vmatpush1.msra.mxu0 0.0
    %2104 = vmatprep.subr.mxu0 0.0
    %2105 = vmatpush1.msra.mxu0 0.0
    %2106 = vmatprep.subr.mxu0 0.0
    %2107 = vmatpush1.msra.mxu0 0.0
    %2108 = vmatprep.subr.mxu0 0.0
    %2109 = vmatpush1.msra.mxu0 0.0
    %2110 = vmatprep.mubr.f32.mxu0 0.0
    %2111 = vmatmul.mubr.f32.gmra.mrb[0].mxu0 %v2041
    %v2112 = vpop.f32.mrb[0].mxu0
    %v2113 = vadd.f32 %v2037, %v2112
    %v2114 = vpop.f32.mrb[0].mxu0
    %2115 = vmatprep.mubr.f32.mxu0 0.0
    %2116 = vmatmul.mubr.f32.gmra.mrb[0].mxu0 %v2044
    %v2117 = vpop.f32.mrb[0].mxu0
    %v2118 = vadd.f32 %v2037, %v2117
    %v2119 = vpop.f32.mrb[0].mxu0
    %2120 = vdwg.mxu0
    %v2121 = vadd.f32 %v1872, %v2113
    %v2122 = vadd.f32 %v1873, %v2118
    %2123 = vst.msk [vmem:[#allocation5] sm:$0xff] %vm63, %v2121
    %2124 = vst.msk [vmem:[#allocation5 + $0x8] sm:$0xff] %vm63, %v2122
    // Predicated region
    $region58: #{tpu_custom_call.1} parent=1 // pred_check
      _
    $region59: #{tpu_custom_call.1} parent=1 // pred_check_branch
      %2126 = sbr.rel (0) target = $region61
    $region60: #{tpu_custom_call.1} parent=1 // pred_region
      %s2128 = ssub.s32 256, 256
      %2129 = vsyncadd [#allocation4], %s2128
      %s2130 = sshll.u32 [#allocation5], 4
      %s2131 = int_to_ptr.vmem [resolvable:$true] %s2130
      %2136 = dma.vmem_to_hbm [thread:$0]  %s2131, 256, %s13, [#allocation4], 128, 128, 8
    $region61: #{tpu_custom_call.1} parent=1 // pred_fallthru
      _
    // Predicated region
    $region62: #{tpu_custom_call.1} parent=1 // pred_check
      _
    $region63: #{tpu_custom_call.1} parent=1 // pred_check_branch
      %2138 = sbr.rel (0) target = $region65
    $region64: #{tpu_custom_call.1} parent=1 // pred_region
      %2139 = dma.done [#allocation4], 256
    $region65: #{tpu_custom_call.1} parent=1 // pred_fallthru
      _
    %2140 = vsyncpa [#allocation3], 1
    %2141 = vsyncpa [#allocation4], 1

</llo_original>
